<compile_context>
chip_gen: v7x
topology: tpu7x:2x2x1
jax: 0.10.0
libtpu: 0.0.40
codegen_flags: <defaults>
</compile_context>

<pallas_src>
import functools

import jax
import jax.numpy as jnp
from jax.experimental import pallas as pl
from jax.experimental.pallas import tpu as pltpu

_VMEM_LIMIT = 32 * 1024 * 1024  # explicit scoped-VMEM budget (safe on v5e/v6e/v7x)


# ---------------------------------------------------------------------------
# helpers
# ---------------------------------------------------------------------------
def _round_up(x, m):
    return (x + m - 1) // m * m


def _pick_tile(dim, max_tile, gran):
    return min(max_tile, _round_up(dim, gran))


def _pad2d(x, rows, cols):
    r, c = x.shape
    if r == rows and c == cols:
        return x
    return jnp.pad(x, ((0, rows - r), (0, cols - c)))


def _quick_gelu(x):
    return x * jax.nn.sigmoid(1.702 * x)


# ---------------------------------------------------------------------------
# Tiled matmul (+bias, +optional activation, +optional fused residual add)
# ---------------------------------------------------------------------------
def _matmul_kernel(*refs, activation, has_residual):
    if has_residual:
        x_ref, w_ref, b_ref, r_ref, o_ref, acc_ref = refs
    else:
        x_ref, w_ref, b_ref, o_ref, acc_ref = refs
        r_ref = None
    k = pl.program_id(2)

    @pl.when(k == 0)
    def _():
        acc_ref[...] = jnp.zeros_like(acc_ref)

    acc_ref[...] += jnp.dot(x_ref[...], w_ref[...],
                            preferred_element_type=jnp.float32)

    @pl.when(k == pl.num_programs(2) - 1)
    def _():
        acc = acc_ref[...] + b_ref[...]
        if activation == "quick_gelu":
            acc = _quick_gelu(acc)
        if r_ref is not None:
            acc = acc + r_ref[...].astype(jnp.float32)
        o_ref[...] = acc.astype(o_ref.dtype)


def matmul_bias(x, w, b=None, residual=None, activation="none",
                out_dtype=jnp.bfloat16, tm_max=256, tn_max=512, tk_max=512):
    """y = act(x @ w + b) (+ residual).  x:[M,K], w:[K,N]."""
    M, K = x.shape
    K2, N = w.shape
    assert K == K2
    tm = _pick_tile(M, tm_max, 8)
    tn = _pick_tile(N, tn_max, 128)
    tk = _pick_tile(K, tk_max, 128)
    Mp, Np, Kp = _round_up(M, tm), _round_up(N, tn), _round_up(K, tk)

    xp = _pad2d(x.astype(jnp.bfloat16), Mp, Kp)
    wp = _pad2d(w.astype(jnp.bfloat16), Kp, Np)
    if b is None:
        bp = jnp.zeros((1, Np), jnp.float32)
    else:
        bp = _pad2d(b.astype(jnp.float32).reshape(1, N), 1, Np)

    has_residual = residual is not None
    inputs = [xp, wp, bp]
    in_specs = [
        pl.BlockSpec((tm, tk), lambda i, j, k: (i, k)),
        pl.BlockSpec((tk, tn), lambda i, j, k: (k, j)),
        pl.BlockSpec((1, tn), lambda i, j, k: (0, j)),
    ]
    if has_residual:
        rp = _pad2d(residual.astype(jnp.bfloat16), Mp, Np)
        inputs.append(rp)
        in_specs.append(pl.BlockSpec((tm, tn), lambda i, j, k: (i, j)))

    out = pl.pallas_call(
        functools.partial(_matmul_kernel, activation=activation,
                          has_residual=has_residual),
        out_shape=jax.ShapeDtypeStruct((Mp, Np), out_dtype),
        grid=(Mp // tm, Np // tn, Kp // tk),
        in_specs=in_specs,
        out_specs=pl.BlockSpec((tm, tn), lambda i, j, k: (i, j)),
        scratch_shapes=[pltpu.VMEM((tm, tn), jnp.float32)],
        compiler_params=pltpu.CompilerParams(
            dimension_semantics=("parallel", "parallel", "arbitrary"),
            vmem_limit_bytes=_VMEM_LIMIT),
    )(*inputs)
    return out[:M, :N]


# ---------------------------------------------------------------------------
# Fused LayerNorm + matmul (+bias, +optional activation).  K (= width) is kept
# as one block so LN statistics see the full feature dim.
# ---------------------------------------------------------------------------
def _ln_matmul_kernel(x_ref, g_ref, b_ref, w_ref, bias_ref, o_ref, *,
                      eps, activation):
    x = x_ref[...].astype(jnp.float32)
    mean = jnp.mean(x, axis=-1, keepdims=True)
    xc = x - mean
    var = jnp.mean(xc * xc, axis=-1, keepdims=True)
    h = xc * jax.lax.rsqrt(var + eps) * g_ref[...] + b_ref[...]
    acc = jnp.dot(h.astype(w_ref.dtype), w_ref[...],
                  preferred_element_type=jnp.float32)
    acc = acc + bias_ref[...]
    if activation == "quick_gelu":
        acc = _quick_gelu(acc)
    o_ref[...] = acc.astype(o_ref.dtype)


def ln_matmul(x, gamma, beta, w, b=None, activation="none",
              out_dtype=jnp.bfloat16, eps=1e-5, tm_max=256, tn_max=512):
    M, K = x.shape
    K2, N = w.shape
    assert K == K2
    tm = _pick_tile(M, tm_max, 8)
    tn = _pick_tile(N, tn_max, 128)
    Mp, Np = _round_up(M, tm), _round_up(N, tn)

    xp = _pad2d(x.astype(jnp.bfloat16), Mp, K)
    wp = _pad2d(w.astype(jnp.bfloat16), K, Np)
    g2 = gamma.astype(jnp.float32).reshape(1, K)
    b2 = beta.astype(jnp.float32).reshape(1, K)
    if b is None:
        biasp = jnp.zeros((1, Np), jnp.float32)
    else:
        biasp = _pad2d(b.astype(jnp.float32).reshape(1, N), 1, Np)

    out = pl.pallas_call(
        functools.partial(_ln_matmul_kernel, eps=eps, activation=activation),
        out_shape=jax.ShapeDtypeStruct((Mp, Np), out_dtype),
        grid=(Mp // tm, Np // tn),
        in_specs=[
            pl.BlockSpec((tm, K), lambda i, j: (i, 0)),
            pl.BlockSpec((1, K), lambda i, j: (0, 0)),
            pl.BlockSpec((1, K), lambda i, j: (0, 0)),
            pl.BlockSpec((K, tn), lambda i, j: (0, j)),
            pl.BlockSpec((1, tn), lambda i, j: (0, j)),
        ],
        out_specs=pl.BlockSpec((tm, tn), lambda i, j: (i, j)),
        compiler_params=pltpu.CompilerParams(
            dimension_semantics=("parallel", "parallel"),
            vmem_limit_bytes=_VMEM_LIMIT),
    )(xp, g2, b2, wp, biasp)
    return out[:M, :N]


# ---------------------------------------------------------------------------
# Standalone row-tiled LayerNorm (ln_pre)
# ---------------------------------------------------------------------------
def _layernorm_kernel(x_ref, g_ref, b_ref, o_ref, *, eps):
    x = x_ref[...].astype(jnp.float32)
    mean = jnp.mean(x, axis=-1, keepdims=True)
    xc = x - mean
    var = jnp.mean(xc * xc, axis=-1, keepdims=True)
    y = xc * jax.lax.rsqrt(var + eps) * g_ref[...] + b_ref[...]
    o_ref[...] = y.astype(o_ref.dtype)


def layernorm(x, gamma, beta, eps=1e-5, out_dtype=jnp.bfloat16, tm_max=512):
    M, D = x.shape
    tm = _pick_tile(M, tm_max, 8)
    Mp = _round_up(M, tm)
    xp = _pad2d(x.astype(jnp.bfloat16), Mp, D)
    g2 = gamma.astype(jnp.float32).reshape(1, D)
    b2 = beta.astype(jnp.float32).reshape(1, D)
    out = pl.pallas_call(
        functools.partial(_layernorm_kernel, eps=eps),
        out_shape=jax.ShapeDtypeStruct((Mp, D), out_dtype),
        grid=(Mp // tm,),
        in_specs=[
            pl.BlockSpec((tm, D), lambda i: (i, 0)),
            pl.BlockSpec((1, D), lambda i: (0, 0)),
            pl.BlockSpec((1, D), lambda i: (0, 0)),
        ],
        out_specs=pl.BlockSpec((tm, D), lambda i: (i, 0)),
        compiler_params=pltpu.CompilerParams(
            dimension_semantics=("parallel",),
            vmem_limit_bytes=_VMEM_LIMIT),
    )(xp, g2, b2)
    return out[:M, :]


# ---------------------------------------------------------------------------
# Multi-head attention: one grid step per batch, all heads per step, reading
# the QKV slab directly and writing a lane-dense [S, width] output block.
# ---------------------------------------------------------------------------
def _attention_kernel(qkv_ref, o_ref, *, heads, scale):
    S, three_w = qkv_ref.shape
    W = three_w // 3
    Dh = W // heads
    outs = []
    for h in range(heads):                                    # static unroll
        q = qkv_ref[:, pl.ds(h * Dh, Dh)] * scale             # scale folded into q
        k = qkv_ref[:, pl.ds(W + h * Dh, Dh)]
        v = qkv_ref[:, pl.ds(2 * W + h * Dh, Dh)]
        s = jax.lax.dot_general(q, k, (((1,), (1,)), ((), ())),
                                preferred_element_type=jnp.float32)
        s = s - jnp.max(s, axis=-1, keepdims=True)
        p = jnp.exp(s)
        denom = jnp.sum(p, axis=-1, keepdims=True)
        o_h = jax.lax.dot_general(p.astype(v.dtype), v,
                                  (((1,), (0,)), ((), ())),
                                  preferred_element_type=jnp.float32)
        outs.append(o_h * pl.reciprocal(denom, approx=True))
    o_ref[...] = jnp.concatenate(outs, axis=-1).astype(o_ref.dtype)


def attention(qkv, heads, out_dtype=jnp.bfloat16):
    """qkv: [B, S, 3*width] (q|k|v stacked, head-major within each)."""
    B, S, three_w = qkv.shape
    W = three_w // 3
    Dh = W // heads
    scale = Dh ** -0.5
    return pl.pallas_call(
        functools.partial(_attention_kernel, heads=heads, scale=scale),
        out_shape=jax.ShapeDtypeStruct((B, S, W), out_dtype),
        grid=(B,),
        in_specs=[pl.BlockSpec((None, S, three_w), lambda b: (b, 0, 0))],
        out_specs=pl.BlockSpec((None, S, W), lambda b: (b, 0, 0)),
        compiler_params=pltpu.CompilerParams(
            dimension_semantics=("parallel",),
            vmem_limit_bytes=_VMEM_LIMIT),
    )(qkv.astype(jnp.bfloat16))


# ---------------------------------------------------------------------------
# Model forward
# ---------------------------------------------------------------------------
def residual_attention_block(x, lp, heads):
    B, S, D = x.shape
    x2 = x.reshape(B * S, D)

    # attention branch: LN1 fused into the QKV projection
    qkv = ln_matmul(x2, lp["ln1_g"], lp["ln1_b"],
                    lp["in_proj_w"], lp["in_proj_b"])              # [B*S, 3D]
    a = attention(qkv.reshape(B, S, 3 * D), heads)                 # [B, S, D]
    # out-projection with the residual add fused into the epilogue
    x2 = matmul_bias(a.reshape(B * S, D), lp["out_proj_w"], lp["out_proj_b"],
                     residual=x2)

    # MLP branch: LN2 + fc + QuickGELU fused; proj with fused residual add
    h = ln_matmul(x2, lp["ln2_g"], lp["ln2_b"], lp["fc_w"], lp["fc_b"],
                  activation="quick_gelu")
    x2 = matmul_bias(h, lp["proj_w"], lp["proj_b"], residual=x2)
    return x2.reshape(B, S, D)


def visual_transformer_forward(x, params, *, patch_size, heads):
    B, C, H, W = x.shape
    p = patch_size
    gh, gw = H // p, W // p
    width = params["class_embedding"].shape[0]

    # conv1 (stride == kernel, no bias) == patchify + tiled matmul
    patches = (x.astype(jnp.bfloat16)
               .reshape(B, C, gh, p, gw, p)
               .transpose(0, 2, 4, 1, 3, 5)                       # [B,gh,gw,C,p,p]
               .reshape(B * gh * gw, C * p * p))
    tok = matmul_bias(patches, params["conv_w_mat"])              # [B*N, width]

    N = gh * gw
    tok = tok.reshape(B, N, width)

    # prepend class token, add positional embedding (cheap, plain JAX, bf16)
    cls = jnp.broadcast_to(params["class_embedding"].reshape(1, 1, width),
                           (B, 1, width))
    xt = jnp.concatenate([cls, tok], axis=1)                      # [B, N+1, width]
    xt = xt + params["positional_embedding"][None]
    S = N + 1

    # ln_pre
    xt = layernorm(xt.reshape(B * S, width),
                   params["ln_pre_g"], params["ln_pre_b"]).reshape(B, S, width)

    # transformer
    for lp in params["layers"]:
        xt = residual_attention_block(xt, lp, heads)

    # ln_post on CLS token fused with the output projection
    cls_out = xt[:, 0, :]                                          # [B, width]
    y = ln_matmul(cls_out, params["ln_post_g"], params["ln_post_b"],
                  params["proj"], None, out_dtype=jnp.float32)     # [B, output_dim]
    return y


# ---------------------------------------------------------------------------
# Deterministic parameter init.  Weights are cached in bf16 ONCE here
# (matmul-ready [in, out] layout); LN params & biases stay f32.
# ---------------------------------------------------------------------------
def init_params(key, *, input_resolution, patch_size, width, layers, heads,
                output_dim):
    scale = width ** -0.5
    n_tok = (input_resolution // patch_size) ** 2 + 1
    keys = iter(jax.random.split(key, 8 + 8 * layers))

    def rnd(shape, s=1.0):
        return (s * jax.random.normal(next(keys), shape)).astype(jnp.float32)

    conv_w = rnd((width, 3, patch_size, patch_size), 0.02)
    params = {
        "conv_w_mat": conv_w.reshape(width, 3 * patch_size * patch_size)
                            .T.astype(jnp.bfloat16),               # [Cpp, width]
        "class_embedding": rnd((width,), scale).astype(jnp.bfloat16),
        "positional_embedding": rnd((n_tok, width), scale).astype(jnp.bfloat16),
        "ln_pre_g": jnp.ones((width,), jnp.float32),
        "ln_pre_b": jnp.zeros((width,), jnp.float32),
        "ln_post_g": jnp.ones((width,), jnp.float32),
        "ln_post_b": jnp.zeros((width,), jnp.float32),
        "proj": rnd((width, output_dim), scale).astype(jnp.bfloat16),
        "layers": [],
    }
    for _ in range(layers):
        lp = {
            "ln1_g": jnp.ones((width,), jnp.float32),
            "ln1_b": jnp.zeros((width,), jnp.float32),
            "in_proj_w": rnd((width, 3 * width), scale).astype(jnp.bfloat16),
            "in_proj_b": jnp.zeros((3 * width,), jnp.float32),
            "out_proj_w": rnd((width, width), scale).astype(jnp.bfloat16),
            "out_proj_b": jnp.zeros((width,), jnp.float32),
            "ln2_g": jnp.ones((width,), jnp.float32),
            "ln2_b": jnp.zeros((width,), jnp.float32),
            "fc_w": rnd((width, 4 * width), scale).astype(jnp.bfloat16),
            "fc_b": jnp.zeros((4 * width,), jnp.float32),
            "proj_w": rnd((4 * width, width), (2 * width) ** -0.5).astype(jnp.bfloat16),
            "proj_b": jnp.zeros((width,), jnp.float32),
        }
        params["layers"].append(lp)
    return params


# ---------------------------------------------------------------------------
if __name__ == "__main__":
    # small config: 16x16 image, 8x8 patches -> 4 patches + CLS = 5 tokens
    input_resolution = 16
    patch_size = 8
    width = 32
    layers = 2
    heads = 4
    output_dim = 16
    batch = 2

    key = jax.random.PRNGKey(0)
    k_param, k_x = jax.random.split(key)
    params = init_params(
        k_param,
        input_resolution=input_resolution,
        patch_size=patch_size,
        width=width,
        layers=layers,
        heads=heads,
        output_dim=output_dim,
    )
    x = jax.random.normal(k_x, (batch, 3, input_resolution, input_resolution),
                          jnp.float32)

    fwd = jax.jit(functools.partial(visual_transformer_forward,
                                    patch_size=patch_size, heads=heads))
    out = fwd(x, params)
    out = jax.block_until_ready(out)
    assert out.shape == (batch, output_dim), out.shape
    assert jnp.all(jnp.isfinite(out))
    print("KERNEL_OK")
</pallas_src>

<mosaic_0001>
module attributes {stable_mosaic.version = 11 : i64} {
  func.func @_matmul_kernel(%arg0: i32, %arg1: i32, %arg2: i32, %arg3: memref<8x256xbf16, #tpu.memory_space<vmem>>, %arg4: memref<256x128xbf16, #tpu.memory_space<vmem>>, %arg5: memref<1x128xf32, #tpu.memory_space<vmem>>, %arg6: memref<8x128xbf16, #tpu.memory_space<vmem>>, %arg7: memref<8x128xf32, #tpu.memory_space<vmem>>) attributes {dimension_semantics = [#tpu.dimension_semantics<parallel>, #tpu.dimension_semantics<parallel>, #tpu.dimension_semantics<arbitrary>], iteration_bounds = array<i64: 1, 1, 1>, scalar_prefetch = 0 : i64, scratch_operands = 1 : i64, tpu.core_type = #tpu.core_type<tc>, window_params = [{transform_indices = @transform_0, window_bounds = array<i64: 8, 256>}, {transform_indices = @transform_1, window_bounds = array<i64: 256, 128>}, {transform_indices = @transform_2, window_bounds = array<i64: 1, 128>}, {transform_indices = @transform_3, window_bounds = array<i64: 8, 128>}]} {
    %c0_i32 = arith.constant 0 : i32
    %0 = arith.cmpi eq, %arg2, %c0_i32 : i32
    %1 = arith.extui %0 : i1 to i32
    %c0_i32_0 = arith.constant 0 : i32
    %2 = arith.cmpi ne, %1, %c0_i32_0 : i32
    scf.if %2 {
      %cst_10 = arith.constant 0.000000e+00 : f32
      %12 = vector.broadcast %cst_10 : f32 to vector<8x128xf32>
      %c0_11 = arith.constant 0 : index
      %c0_12 = arith.constant 0 : index
      %13 = vector.load %arg7[%c0_11, %c0_12] : memref<8x128xf32, #tpu.memory_space<vmem>>, vector<8x128xf32>
      tpu.vector_store %arg7[%c0_11, %c0_12], %12 {strides = array<i32>} : memref<8x128xf32, #tpu.memory_space<vmem>>, vector<8x128xf32>,
    } else {
    }
    %c0 = arith.constant 0 : index
    %c0_1 = arith.constant 0 : index
    %3 = vector.load %arg7[%c0, %c0_1] : memref<8x128xf32, #tpu.memory_space<vmem>>, vector<8x128xf32>
    %c0_2 = arith.constant 0 : index
    %c0_3 = arith.constant 0 : index
    %4 = vector.load %arg3[%c0_2, %c0_3] : memref<8x256xbf16, #tpu.memory_space<vmem>>, vector<8x256xbf16>
    %c0_4 = arith.constant 0 : index
    %c0_5 = arith.constant 0 : index
    %5 = vector.load %arg4[%c0_4, %c0_5] : memref<256x128xbf16, #tpu.memory_space<vmem>>, vector<256x128xbf16>
    %cst = arith.constant dense<0.000000e+00> : vector<8x128xf32>
    %6 = tpu.matmul %4, %5, %cst {dimension_numbers = #tpu.dot_dimension_numbers<[1], [0], [0], [1], [0, 0, 1, 1], [], []>} : vector<8x256xbf16>, vector<256x128xbf16>, vector<8x128xf32> -> vector<8x128xf32>
    %7 = arith.addf %3, %6 : vector<8x128xf32>
    %c0_6 = arith.constant 0 : index
    %c0_7 = arith.constant 0 : index
    %8 = vector.load %arg7[%c0_6, %c0_7] : memref<8x128xf32, #tpu.memory_space<vmem>>, vector<8x128xf32>
    tpu.vector_store %arg7[%c0_6, %c0_7], %7 {strides = array<i32>} : memref<8x128xf32, #tpu.memory_space<vmem>>, vector<8x128xf32>,
    %c0_i32_8 = arith.constant 0 : i32
    %9 = arith.cmpi eq, %arg2, %c0_i32_8 : i32
    %10 = arith.extui %9 : i1 to i32
    %c0_i32_9 = arith.constant 0 : i32
    %11 = arith.cmpi ne, %10, %c0_i32_9 : i32
    scf.if %11 {
      %c0_10 = arith.constant 0 : index
      %c0_11 = arith.constant 0 : index
      %12 = vector.load %arg7[%c0_10, %c0_11] : memref<8x128xf32, #tpu.memory_space<vmem>>, vector<8x128xf32>
      %c0_12 = arith.constant 0 : index
      %c0_13 = arith.constant 0 : index
      %13 = vector.load %arg5[%c0_12, %c0_13] : memref<1x128xf32, #tpu.memory_space<vmem>>, vector<1x128xf32>
      %14 = vector.broadcast %13 : vector<1x128xf32> to vector<8x128xf32>
      %15 = arith.addf %12, %14 : vector<8x128xf32>
      %16 = arith.truncf %15 : vector<8x128xf32> to vector<8x128xbf16>
      %c0_14 = arith.constant 0 : index
      %c0_15 = arith.constant 0 : index
      %17 = vector.load %arg6[%c0_14, %c0_15] : memref<8x128xbf16, #tpu.memory_space<vmem>>, vector<8x128xbf16>
      tpu.vector_store %arg6[%c0_14, %c0_15], %16 {strides = array<i32>} : memref<8x128xbf16, #tpu.memory_space<vmem>>, vector<8x128xbf16>,
    } else {
    }
    return
  }
  func.func @transform_0(%arg0: i32, %arg1: i32, %arg2: i32) -> (i32, i32) {
    %c0_i32 = arith.constant 0 : i32
    return %arg0, %arg2 : i32, i32
  }
  func.func @transform_1(%arg0: i32, %arg1: i32, %arg2: i32) -> (i32, i32) {
    %c0_i32 = arith.constant 0 : i32
    return %arg2, %arg1 : i32, i32
  }
  func.func @transform_2(%arg0: i32, %arg1: i32, %arg2: i32) -> (i32, i32) {
    %c0_i32 = arith.constant 0 : i32
    %c0_i32_0 = arith.constant 0 : i32
    return %c0_i32, %arg1 : i32, i32
  }
  func.func @transform_3(%arg0: i32, %arg1: i32, %arg2: i32) -> (i32, i32) {
    %c0_i32 = arith.constant 0 : i32
    return %arg0, %arg1 : i32, i32
  }
}

module attributes {stable_mosaic.version = 11 : i64} {
  func.func @_layernorm_kernel(%arg0: i32, %arg1: memref<16x32xbf16, #tpu.memory_space<vmem>>, %arg2: memref<1x32xf32, #tpu.memory_space<vmem>>, %arg3: memref<1x32xf32, #tpu.memory_space<vmem>>, %arg4: memref<16x32xbf16, #tpu.memory_space<vmem>>) attributes {dimension_semantics = [#tpu.dimension_semantics<parallel>], iteration_bounds = array<i64: 1>, scalar_prefetch = 0 : i64, scratch_operands = 0 : i64, tpu.core_type = #tpu.core_type<tc>, window_params = [{transform_indices = @transform_0, window_bounds = array<i64: 16, 32>}, {pipeline_mode = #tpu.pipeline_mode<synchronous>, transform_indices = @transform_1, window_bounds = array<i64: 1, 32>}, {pipeline_mode = #tpu.pipeline_mode<synchronous>, transform_indices = @transform_2, window_bounds = array<i64: 1, 32>}, {transform_indices = @transform_3, window_bounds = array<i64: 16, 32>}]} {
    %c0 = arith.constant 0 : index
    %c0_0 = arith.constant 0 : index
    %0 = vector.load %arg1[%c0, %c0_0] : memref<16x32xbf16, #tpu.memory_space<vmem>>, vector<16x32xbf16>
    %1 = arith.extf %0 : vector<16x32xbf16> to vector<16x32xf32>
    %cst = arith.constant dense<0.000000e+00> : vector<16xf32>
    %2 = vector.multi_reduction <add>, %1, %cst [1] : vector<16x32xf32> to vector<16xf32>
    %3 = vector.shape_cast %2 : vector<16xf32> to vector<16x1xf32>
    %cst_1 = arith.constant 3.200000e+01 : f32
    %4 = vector.broadcast %cst_1 : f32 to vector<16x1xf32>
    %5 = arith.divf %3, %4 : vector<16x1xf32>
    %6 = vector.broadcast %5 : vector<16x1xf32> to vector<16x32xf32>
    %7 = arith.subf %1, %6 : vector<16x32xf32>
    %8 = arith.mulf %7, %7 : vector<16x32xf32>
    %cst_2 = arith.constant dense<0.000000e+00> : vector<16xf32>
    %9 = vector.multi_reduction <add>, %8, %cst_2 [1] : vector<16x32xf32> to vector<16xf32>
    %10 = vector.shape_cast %9 : vector<16xf32> to vector<16x1xf32>
    %cst_3 = arith.constant 3.200000e+01 : f32
    %11 = vector.broadcast %cst_3 : f32 to vector<16x1xf32>
    %12 = arith.divf %10, %11 : vector<16x1xf32>
    %cst_4 = arith.constant 9.99999974E-6 : f32
    %13 = vector.broadcast %cst_4 : f32 to vector<16x1xf32>
    %14 = arith.addf %12, %13 : vector<16x1xf32>
    %15 = math.rsqrt %14 : vector<16x1xf32>
    %16 = vector.broadcast %15 : vector<16x1xf32> to vector<16x32xf32>
    %17 = arith.mulf %7, %16 : vector<16x32xf32>
    %c0_5 = arith.constant 0 : index
    %c0_6 = arith.constant 0 : index
    %18 = vector.load %arg2[%c0_5, %c0_6] : memref<1x32xf32, #tpu.memory_space<vmem>>, vector<1x32xf32>
    %19 = vector.broadcast %18 : vector<1x32xf32> to vector<16x32xf32>
    %20 = arith.mulf %17, %19 : vector<16x32xf32>
    %c0_7 = arith.constant 0 : index
    %c0_8 = arith.constant 0 : index
    %21 = vector.load %arg3[%c0_7, %c0_8] : memref<1x32xf32, #tpu.memory_space<vmem>>, vector<1x32xf32>
    %22 = vector.broadcast %21 : vector<1x32xf32> to vector<16x32xf32>
    %23 = arith.addf %20, %22 : vector<16x32xf32>
    %24 = arith.truncf %23 : vector<16x32xf32> to vector<16x32xbf16>
    %c0_9 = arith.constant 0 : index
    %c0_10 = arith.constant 0 : index
    %25 = vector.load %arg4[%c0_9, %c0_10] : memref<16x32xbf16, #tpu.memory_space<vmem>>, vector<16x32xbf16>
    tpu.vector_store %arg4[%c0_9, %c0_10], %24 {strides = array<i32>} : memref<16x32xbf16, #tpu.memory_space<vmem>>, vector<16x32xbf16>,
    return
  }
  func.func @transform_0(%arg0: i32) -> (i32, i32) {
    %c0_i32 = arith.constant 0 : i32
    %c0_i32_0 = arith.constant 0 : i32
    return %arg0, %c0_i32 : i32, i32
  }
  func.func @transform_1(%arg0: i32) -> (i32, i32) {
    %c0_i32 = arith.constant 0 : i32
    %c0_i32_0 = arith.constant 0 : i32
    %c0_i32_1 = arith.constant 0 : i32
    return %c0_i32, %c0_i32_0 : i32, i32
  }
  func.func @transform_2(%arg0: i32) -> (i32, i32) {
    %c0_i32 = arith.constant 0 : i32
    %c0_i32_0 = arith.constant 0 : i32
    %c0_i32_1 = arith.constant 0 : i32
    return %c0_i32, %c0_i32_0 : i32, i32
  }
  func.func @transform_3(%arg0: i32) -> (i32, i32) {
    %c0_i32 = arith.constant 0 : i32
    %c0_i32_0 = arith.constant 0 : i32
    return %arg0, %c0_i32 : i32, i32
  }
}

module attributes {stable_mosaic.version = 11 : i64} {
  func.func @_ln_matmul_kernel(%arg0: i32, %arg1: i32, %arg2: memref<16x32xbf16, #tpu.memory_space<vmem>>, %arg3: memref<1x32xf32, #tpu.memory_space<vmem>>, %arg4: memref<1x32xf32, #tpu.memory_space<vmem>>, %arg5: memref<32x128xbf16, #tpu.memory_space<vmem>>, %arg6: memref<1x128xf32, #tpu.memory_space<vmem>>, %arg7: memref<16x128xbf16, #tpu.memory_space<vmem>>) attributes {dimension_semantics = [#tpu.dimension_semantics<parallel>, #tpu.dimension_semantics<parallel>], iteration_bounds = array<i64: 1, 1>, scalar_prefetch = 0 : i64, scratch_operands = 0 : i64, tpu.core_type = #tpu.core_type<tc>, window_params = [{transform_indices = @transform_0, window_bounds = array<i64: 16, 32>}, {pipeline_mode = #tpu.pipeline_mode<synchronous>, transform_indices = @transform_1, window_bounds = array<i64: 1, 32>}, {pipeline_mode = #tpu.pipeline_mode<synchronous>, transform_indices = @transform_2, window_bounds = array<i64: 1, 32>}, {transform_indices = @transform_3, window_bounds = array<i64: 32, 128>}, {transform_indices = @transform_4, window_bounds = array<i64: 1, 128>}, {transform_indices = @transform_5, window_bounds = array<i64: 16, 128>}]} {
    %c0 = arith.constant 0 : index
    %c0_0 = arith.constant 0 : index
    %0 = vector.load %arg2[%c0, %c0_0] : memref<16x32xbf16, #tpu.memory_space<vmem>>, vector<16x32xbf16>
    %1 = arith.extf %0 : vector<16x32xbf16> to vector<16x32xf32>
    %cst = arith.constant dense<0.000000e+00> : vector<16xf32>
    %2 = vector.multi_reduction <add>, %1, %cst [1] : vector<16x32xf32> to vector<16xf32>
    %3 = vector.shape_cast %2 : vector<16xf32> to vector<16x1xf32>
    %cst_1 = arith.constant 3.200000e+01 : f32
    %4 = vector.broadcast %cst_1 : f32 to vector<16x1xf32>
    %5 = arith.divf %3, %4 : vector<16x1xf32>
    %6 = vector.broadcast %5 : vector<16x1xf32> to vector<16x32xf32>
    %7 = arith.subf %1, %6 : vector<16x32xf32>
    %8 = arith.mulf %7, %7 : vector<16x32xf32>
    %cst_2 = arith.constant dense<0.000000e+00> : vector<16xf32>
    %9 = vector.multi_reduction <add>, %8, %cst_2 [1] : vector<16x32xf32> to vector<16xf32>
    %10 = vector.shape_cast %9 : vector<16xf32> to vector<16x1xf32>
    %cst_3 = arith.constant 3.200000e+01 : f32
    %11 = vector.broadcast %cst_3 : f32 to vector<16x1xf32>
    %12 = arith.divf %10, %11 : vector<16x1xf32>
    %cst_4 = arith.constant 9.99999974E-6 : f32
    %13 = vector.broadcast %cst_4 : f32 to vector<16x1xf32>
    %14 = arith.addf %12, %13 : vector<16x1xf32>
    %15 = math.rsqrt %14 : vector<16x1xf32>
    %16 = vector.broadcast %15 : vector<16x1xf32> to vector<16x32xf32>
    %17 = arith.mulf %7, %16 : vector<16x32xf32>
    %c0_5 = arith.constant 0 : index
    %c0_6 = arith.constant 0 : index
    %18 = vector.load %arg3[%c0_5, %c0_6] : memref<1x32xf32, #tpu.memory_space<vmem>>, vector<1x32xf32>
    %19 = vector.broadcast %18 : vector<1x32xf32> to vector<16x32xf32>
    %20 = arith.mulf %17, %19 : vector<16x32xf32>
    %c0_7 = arith.constant 0 : index
    %c0_8 = arith.constant 0 : index
    %21 = vector.load %arg4[%c0_7, %c0_8] : memref<1x32xf32, #tpu.memory_space<vmem>>, vector<1x32xf32>
    %22 = vector.broadcast %21 : vector<1x32xf32> to vector<16x32xf32>
    %23 = arith.addf %20, %22 : vector<16x32xf32>
    %24 = arith.truncf %23 : vector<16x32xf32> to vector<16x32xbf16>
    %c0_9 = arith.constant 0 : index
    %c0_10 = arith.constant 0 : index
    %25 = vector.load %arg5[%c0_9, %c0_10] : memref<32x128xbf16, #tpu.memory_space<vmem>>, vector<32x128xbf16>
    %cst_11 = arith.constant dense<0.000000e+00> : vector<16x128xf32>
    %26 = tpu.matmul %24, %25, %cst_11 {dimension_numbers = #tpu.dot_dimension_numbers<[1], [0], [0], [1], [0, 0, 1, 1], [], []>} : vector<16x32xbf16>, vector<32x128xbf16>, vector<16x128xf32> -> vector<16x128xf32>
    %c0_12 = arith.constant 0 : index
    %c0_13 = arith.constant 0 : index
    %27 = vector.load %arg6[%c0_12, %c0_13] : memref<1x128xf32, #tpu.memory_space<vmem>>, vector<1x128xf32>
    %28 = vector.broadcast %27 : vector<1x128xf32> to vector<16x128xf32>
    %29 = arith.addf %26, %28 : vector<16x128xf32>
    %30 = arith.truncf %29 : vector<16x128xf32> to vector<16x128xbf16>
    %c0_14 = arith.constant 0 : index
    %c0_15 = arith.constant 0 : index
    %31 = vector.load %arg7[%c0_14, %c0_15] : memref<16x128xbf16, #tpu.memory_space<vmem>>, vector<16x128xbf16>
    tpu.vector_store %arg7[%c0_14, %c0_15], %30 {strides = array<i32>} : memref<16x128xbf16, #tpu.memory_space<vmem>>, vector<16x128xbf16>,
    return
  }
  func.func @transform_0(%arg0: i32, %arg1: i32) -> (i32, i32) {
    %c0_i32 = arith.constant 0 : i32
    %c0_i32_0 = arith.constant 0 : i32
    return %arg0, %c0_i32 : i32, i32
  }
  func.func @transform_1(%arg0: i32, %arg1: i32) -> (i32, i32) {
    %c0_i32 = arith.constant 0 : i32
    %c0_i32_0 = arith.constant 0 : i32
    %c0_i32_1 = arith.constant 0 : i32
    return %c0_i32, %c0_i32_0 : i32, i32
  }
  func.func @transform_2(%arg0: i32, %arg1: i32) -> (i32, i32) {
    %c0_i32 = arith.constant 0 : i32
    %c0_i32_0 = arith.constant 0 : i32
    %c0_i32_1 = arith.constant 0 : i32
    return %c0_i32, %c0_i32_0 : i32, i32
  }
  func.func @transform_3(%arg0: i32, %arg1: i32) -> (i32, i32) {
    %c0_i32 = arith.constant 0 : i32
    %c0_i32_0 = arith.constant 0 : i32
    return %c0_i32, %arg1 : i32, i32
  }
  func.func @transform_4(%arg0: i32, %arg1: i32) -> (i32, i32) {
    %c0_i32 = arith.constant 0 : i32
    %c0_i32_0 = arith.constant 0 : i32
    return %c0_i32, %arg1 : i32, i32
  }
  func.func @transform_5(%arg0: i32, %arg1: i32) -> (i32, i32) {
    %c0_i32 = arith.constant 0 : i32
    return %arg0, %arg1 : i32, i32
  }
}

module attributes {stable_mosaic.version = 11 : i64} {
  func.func @_attention_kernel(%arg0: i32, %arg1: memref<1x5x96xbf16, #tpu.memory_space<vmem>>, %arg2: memref<1x5x32xbf16, #tpu.memory_space<vmem>>) attributes {dimension_semantics = [#tpu.dimension_semantics<parallel>], iteration_bounds = array<i64: 2>, scalar_prefetch = 0 : i64, scratch_operands = 0 : i64, tpu.core_type = #tpu.core_type<tc>, window_params = [{transform_indices = @transform_0, window_bounds = array<i64: 1, 5, 96>}, {transform_indices = @transform_1, window_bounds = array<i64: 1, 5, 32>}]} {
    %c0 = arith.constant 0 : index
    %c0_0 = arith.constant 0 : index
    %c0_1 = arith.constant 0 : index
    %0 = vector.load %arg1[%c0, %c0_0, %c0_1] : memref<1x5x96xbf16, #tpu.memory_space<vmem>>, vector<1x5x8xbf16>
    %1 = vector.shape_cast %0 : vector<1x5x8xbf16> to vector<5x8xbf16>
    %cst = arith.constant 3.535160e-01 : bf16
    %2 = vector.broadcast %cst : bf16 to vector<5x8xbf16>
    %3 = arith.mulf %1, %2 : vector<5x8xbf16>
    %c0_2 = arith.constant 0 : index
    %c0_3 = arith.constant 0 : index
    %c32 = arith.constant 32 : index
    %4 = vector.load %arg1[%c0_2, %c0_3, %c32] : memref<1x5x96xbf16, #tpu.memory_space<vmem>>, vector<1x5x8xbf16>
    %5 = vector.shape_cast %4 : vector<1x5x8xbf16> to vector<5x8xbf16>
    %c0_4 = arith.constant 0 : index
    %c0_5 = arith.constant 0 : index
    %c64 = arith.constant 64 : index
    %6 = vector.load %arg1[%c0_4, %c0_5, %c64] : memref<1x5x96xbf16, #tpu.memory_space<vmem>>, vector<1x5x8xbf16>
    %7 = vector.shape_cast %6 : vector<1x5x8xbf16> to vector<5x8xbf16>
    %cst_6 = arith.constant dense<0.000000e+00> : vector<5x5xf32>
    %8 = tpu.matmul %3, %5, %cst_6 {dimension_numbers = #tpu.dot_dimension_numbers<[1], [1], [0], [0], [0, 0, 1, 0], [], []>} : vector<5x8xbf16>, vector<5x8xbf16>, vector<5x5xf32> -> vector<5x5xf32>
    %cst_7 = arith.constant dense<0xFF800000> : vector<5xf32>
    %9 = vector.multi_reduction <maximumf>, %8, %cst_7 [1] : vector<5x5xf32> to vector<5xf32>
    %10 = vector.shape_cast %9 : vector<5xf32> to vector<5x1xf32>
    %11 = vector.broadcast %10 : vector<5x1xf32> to vector<5x5xf32>
    %12 = arith.subf %8, %11 : vector<5x5xf32>
    %13 = math.exp %12 : vector<5x5xf32>
    %cst_8 = arith.constant dense<0.000000e+00> : vector<5xf32>
    %14 = vector.multi_reduction <add>, %13, %cst_8 [1] : vector<5x5xf32> to vector<5xf32>
    %15 = vector.shape_cast %14 : vector<5xf32> to vector<5x1xf32>
    %16 = arith.truncf %13 : vector<5x5xf32> to vector<5x5xbf16>
    %cst_9 = arith.constant dense<0.000000e+00> : vector<5x8xf32>
    %17 = tpu.matmul %16, %7, %cst_9 {dimension_numbers = #tpu.dot_dimension_numbers<[1], [0], [0], [1], [0, 0, 1, 1], [], []>} : vector<5x5xbf16>, vector<5x8xbf16>, vector<5x8xf32> -> vector<5x8xf32>
    %18 = tpu.reciprocal %15 {approx = true} : vector<5x1xf32> -> vector<5x1xf32>
    %19 = vector.broadcast %18 : vector<5x1xf32> to vector<5x8xf32>
    %20 = arith.mulf %17, %19 : vector<5x8xf32>
    %c0_10 = arith.constant 0 : index
    %c0_11 = arith.constant 0 : index
    %c8 = arith.constant 8 : index
    %21 = vector.load %arg1[%c0_10, %c0_11, %c8] : memref<1x5x96xbf16, #tpu.memory_space<vmem>>, vector<1x5x8xbf16>
    %22 = vector.shape_cast %21 : vector<1x5x8xbf16> to vector<5x8xbf16>
    %cst_12 = arith.constant 3.535160e-01 : bf16
    %23 = vector.broadcast %cst_12 : bf16 to vector<5x8xbf16>
    %24 = arith.mulf %22, %23 : vector<5x8xbf16>
    %c0_13 = arith.constant 0 : index
    %c0_14 = arith.constant 0 : index
    %c40 = arith.constant 40 : index
    %25 = vector.load %arg1[%c0_13, %c0_14, %c40] : memref<1x5x96xbf16, #tpu.memory_space<vmem>>, vector<1x5x8xbf16>
    %26 = vector.shape_cast %25 : vector<1x5x8xbf16> to vector<5x8xbf16>
    %c0_15 = arith.constant 0 : index
    %c0_16 = arith.constant 0 : index
    %c72 = arith.constant 72 : index
    %27 = vector.load %arg1[%c0_15, %c0_16, %c72] : memref<1x5x96xbf16, #tpu.memory_space<vmem>>, vector<1x5x8xbf16>
    %28 = vector.shape_cast %27 : vector<1x5x8xbf16> to vector<5x8xbf16>
    %cst_17 = arith.constant dense<0.000000e+00> : vector<5x5xf32>
    %29 = tpu.matmul %24, %26, %cst_17 {dimension_numbers = #tpu.dot_dimension_numbers<[1], [1], [0], [0], [0, 0, 1, 0], [], []>} : vector<5x8xbf16>, vector<5x8xbf16>, vector<5x5xf32> -> vector<5x5xf32>
    %cst_18 = arith.constant dense<0xFF800000> : vector<5xf32>
    %30 = vector.multi_reduction <maximumf>, %29, %cst_18 [1] : vector<5x5xf32> to vector<5xf32>
    %31 = vector.shape_cast %30 : vector<5xf32> to vector<5x1xf32>
    %32 = vector.broadcast %31 : vector<5x1xf32> to vector<5x5xf32>
    %33 = arith.subf %29, %32 : vector<5x5xf32>
    %34 = math.exp %33 : vector<5x5xf32>
    %cst_19 = arith.constant dense<0.000000e+00> : vector<5xf32>
    %35 = vector.multi_reduction <add>, %34, %cst_19 [1] : vector<5x5xf32> to vector<5xf32>
    %36 = vector.shape_cast %35 : vector<5xf32> to vector<5x1xf32>
    %37 = arith.truncf %34 : vector<5x5xf32> to vector<5x5xbf16>
    %cst_20 = arith.constant dense<0.000000e+00> : vector<5x8xf32>
    %38 = tpu.matmul %37, %28, %cst_20 {dimension_numbers = #tpu.dot_dimension_numbers<[1], [0], [0], [1], [0, 0, 1, 1], [], []>} : vector<5x5xbf16>, vector<5x8xbf16>, vector<5x8xf32> -> vector<5x8xf32>
    %39 = tpu.reciprocal %36 {approx = true} : vector<5x1xf32> -> vector<5x1xf32>
    %40 = vector.broadcast %39 : vector<5x1xf32> to vector<5x8xf32>
    %41 = arith.mulf %38, %40 : vector<5x8xf32>
    %c0_21 = arith.constant 0 : index
    %c0_22 = arith.constant 0 : index
    %c16 = arith.constant 16 : index
    %42 = vector.load %arg1[%c0_21, %c0_22, %c16] : memref<1x5x96xbf16, #tpu.memory_space<vmem>>, vector<1x5x8xbf16>
    %43 = vector.shape_cast %42 : vector<1x5x8xbf16> to vector<5x8xbf16>
    %cst_23 = arith.constant 3.535160e-01 : bf16
    %44 = vector.broadcast %cst_23 : bf16 to vector<5x8xbf16>
    %45 = arith.mulf %43, %44 : vector<5x8xbf16>
    %c0_24 = arith.constant 0 : index
    %c0_25 = arith.constant 0 : index
    %c48 = arith.constant 48 : index
    %46 = vector.load %arg1[%c0_24, %c0_25, %c48] : memref<1x5x96xbf16, #tpu.memory_space<vmem>>, vector<1x5x8xbf16>
    %47 = vector.shape_cast %46 : vector<1x5x8xbf16> to vector<5x8xbf16>
    %c0_26 = arith.constant 0 : index
    %c0_27 = arith.constant 0 : index
    %c80 = arith.constant 80 : index
    %48 = vector.load %arg1[%c0_26, %c0_27, %c80] : memref<1x5x96xbf16, #tpu.memory_space<vmem>>, vector<1x5x8xbf16>
    %49 = vector.shape_cast %48 : vector<1x5x8xbf16> to vector<5x8xbf16>
    %cst_28 = arith.constant dense<0.000000e+00> : vector<5x5xf32>
    %50 = tpu.matmul %45, %47, %cst_28 {dimension_numbers = #tpu.dot_dimension_numbers<[1], [1], [0], [0], [0, 0, 1, 0], [], []>} : vector<5x8xbf16>, vector<5x8xbf16>, vector<5x5xf32> -> vector<5x5xf32>
    %cst_29 = arith.constant dense<0xFF800000> : vector<5xf32>
    %51 = vector.multi_reduction <maximumf>, %50, %cst_29 [1] : vector<5x5xf32> to vector<5xf32>
    %52 = vector.shape_cast %51 : vector<5xf32> to vector<5x1xf32>
    %53 = vector.broadcast %52 : vector<5x1xf32> to vector<5x5xf32>
    %54 = arith.subf %50, %53 : vector<5x5xf32>
    %55 = math.exp %54 : vector<5x5xf32>
    %cst_30 = arith.constant dense<0.000000e+00> : vector<5xf32>
    %56 = vector.multi_reduction <add>, %55, %cst_30 [1] : vector<5x5xf32> to vector<5xf32>
    %57 = vector.shape_cast %56 : vector<5xf32> to vector<5x1xf32>
    %58 = arith.truncf %55 : vector<5x5xf32> to vector<5x5xbf16>
    %cst_31 = arith.constant dense<0.000000e+00> : vector<5x8xf32>
    %59 = tpu.matmul %58, %49, %cst_31 {dimension_numbers = #tpu.dot_dimension_numbers<[1], [0], [0], [1], [0, 0, 1, 1], [], []>} : vector<5x5xbf16>, vector<5x8xbf16>, vector<5x8xf32> -> vector<5x8xf32>
    %60 = tpu.reciprocal %57 {approx = true} : vector<5x1xf32> -> vector<5x1xf32>
    %61 = vector.broadcast %60 : vector<5x1xf32> to vector<5x8xf32>
    %62 = arith.mulf %59, %61 : vector<5x8xf32>
    %c0_32 = arith.constant 0 : index
    %c0_33 = arith.constant 0 : index
    %c24 = arith.constant 24 : index
    %63 = vector.load %arg1[%c0_32, %c0_33, %c24] : memref<1x5x96xbf16, #tpu.memory_space<vmem>>, vector<1x5x8xbf16>
    %64 = vector.shape_cast %63 : vector<1x5x8xbf16> to vector<5x8xbf16>
    %cst_34 = arith.constant 3.535160e-01 : bf16
    %65 = vector.broadcast %cst_34 : bf16 to vector<5x8xbf16>
    %66 = arith.mulf %64, %65 : vector<5x8xbf16>
    %c0_35 = arith.constant 0 : index
    %c0_36 = arith.constant 0 : index
    %c56 = arith.constant 56 : index
    %67 = vector.load %arg1[%c0_35, %c0_36, %c56] : memref<1x5x96xbf16, #tpu.memory_space<vmem>>, vector<1x5x8xbf16>
    %68 = vector.shape_cast %67 : vector<1x5x8xbf16> to vector<5x8xbf16>
    %c0_37 = arith.constant 0 : index
    %c0_38 = arith.constant 0 : index
    %c88 = arith.constant 88 : index
    %69 = vector.load %arg1[%c0_37, %c0_38, %c88] : memref<1x5x96xbf16, #tpu.memory_space<vmem>>, vector<1x5x8xbf16>
    %70 = vector.shape_cast %69 : vector<1x5x8xbf16> to vector<5x8xbf16>
    %cst_39 = arith.constant dense<0.000000e+00> : vector<5x5xf32>
    %71 = tpu.matmul %66, %68, %cst_39 {dimension_numbers = #tpu.dot_dimension_numbers<[1], [1], [0], [0], [0, 0, 1, 0], [], []>} : vector<5x8xbf16>, vector<5x8xbf16>, vector<5x5xf32> -> vector<5x5xf32>
    %cst_40 = arith.constant dense<0xFF800000> : vector<5xf32>
    %72 = vector.multi_reduction <maximumf>, %71, %cst_40 [1] : vector<5x5xf32> to vector<5xf32>
    %73 = vector.shape_cast %72 : vector<5xf32> to vector<5x1xf32>
    %74 = vector.broadcast %73 : vector<5x1xf32> to vector<5x5xf32>
    %75 = arith.subf %71, %74 : vector<5x5xf32>
    %76 = math.exp %75 : vector<5x5xf32>
    %cst_41 = arith.constant dense<0.000000e+00> : vector<5xf32>
    %77 = vector.multi_reduction <add>, %76, %cst_41 [1] : vector<5x5xf32> to vector<5xf32>
    %78 = vector.shape_cast %77 : vector<5xf32> to vector<5x1xf32>
    %79 = arith.truncf %76 : vector<5x5xf32> to vector<5x5xbf16>
    %cst_42 = arith.constant dense<0.000000e+00> : vector<5x8xf32>
    %80 = tpu.matmul %79, %70, %cst_42 {dimension_numbers = #tpu.dot_dimension_numbers<[1], [0], [0], [1], [0, 0, 1, 1], [], []>} : vector<5x5xbf16>, vector<5x8xbf16>, vector<5x8xf32> -> vector<5x8xf32>
    %81 = tpu.reciprocal %78 {approx = true} : vector<5x1xf32> -> vector<5x1xf32>
    %82 = vector.broadcast %81 : vector<5x1xf32> to vector<5x8xf32>
    %83 = arith.mulf %80, %82 : vector<5x8xf32>
    %84 = tpu.concatenate %20, %41, %62, %83 in 1 : vector<5x8xf32>, vector<5x8xf32>, vector<5x8xf32>, vector<5x8xf32> -> vector<5x32xf32>
    %85 = arith.truncf %84 : vector<5x32xf32> to vector<5x32xbf16>
    %c0_43 = arith.constant 0 : index
    %c0_44 = arith.constant 0 : index
    %c0_45 = arith.constant 0 : index
    %86 = vector.load %arg2[%c0_43, %c0_44, %c0_45] : memref<1x5x32xbf16, #tpu.memory_space<vmem>>, vector<1x5x32xbf16>
    %87 = vector.shape_cast %86 : vector<1x5x32xbf16> to vector<5x32xbf16>
    %88 = vector.shape_cast %85 : vector<5x32xbf16> to vector<1x5x32xbf16>
    tpu.vector_store %arg2[%c0_43, %c0_44, %c0_45], %88 {strides = array<i32>} : memref<1x5x32xbf16, #tpu.memory_space<vmem>>, vector<1x5x32xbf16>,
    return
  }
  func.func @transform_0(%arg0: i32) -> (i32, i32, i32) {
    %c0_i32 = arith.constant 0 : i32
    %c0_i32_0 = arith.constant 0 : i32
    %c0_i32_1 = arith.constant 0 : i32
    return %arg0, %c0_i32, %c0_i32_0 : i32, i32, i32
  }
  func.func @transform_1(%arg0: i32) -> (i32, i32, i32) {
    %c0_i32 = arith.constant 0 : i32
    %c0_i32_0 = arith.constant 0 : i32
    %c0_i32_1 = arith.constant 0 : i32
    return %arg0, %c0_i32, %c0_i32_0 : i32, i32, i32
  }
}

module attributes {stable_mosaic.version = 11 : i64} {
  func.func @_matmul_kernel(%arg0: i32, %arg1: i32, %arg2: i32, %arg3: memref<16x128xbf16, #tpu.memory_space<vmem>>, %arg4: memref<128x128xbf16, #tpu.memory_space<vmem>>, %arg5: memref<1x128xf32, #tpu.memory_space<vmem>>, %arg6: memref<16x128xbf16, #tpu.memory_space<vmem>>, %arg7: memref<16x128xbf16, #tpu.memory_space<vmem>>, %arg8: memref<16x128xf32, #tpu.memory_space<vmem>>) attributes {dimension_semantics = [#tpu.dimension_semantics<parallel>, #tpu.dimension_semantics<parallel>, #tpu.dimension_semantics<arbitrary>], iteration_bounds = array<i64: 1, 1, 1>, scalar_prefetch = 0 : i64, scratch_operands = 1 : i64, tpu.core_type = #tpu.core_type<tc>, window_params = [{transform_indices = @transform_0, window_bounds = array<i64: 16, 128>}, {transform_indices = @transform_1, window_bounds = array<i64: 128, 128>}, {transform_indices = @transform_2, window_bounds = array<i64: 1, 128>}, {transform_indices = @transform_3, window_bounds = array<i64: 16, 128>}, {transform_indices = @transform_4, window_bounds = array<i64: 16, 128>}]} {
    %c0_i32 = arith.constant 0 : i32
    %0 = arith.cmpi eq, %arg2, %c0_i32 : i32
    %1 = arith.extui %0 : i1 to i32
    %c0_i32_0 = arith.constant 0 : i32
    %2 = arith.cmpi ne, %1, %c0_i32_0 : i32
    scf.if %2 {
      %cst_10 = arith.constant 0.000000e+00 : f32
      %12 = vector.broadcast %cst_10 : f32 to vector<16x128xf32>
      %c0_11 = arith.constant 0 : index
      %c0_12 = arith.constant 0 : index
      %13 = vector.load %arg8[%c0_11, %c0_12] : memref<16x128xf32, #tpu.memory_space<vmem>>, vector<16x128xf32>
      tpu.vector_store %arg8[%c0_11, %c0_12], %12 {strides = array<i32>} : memref<16x128xf32, #tpu.memory_space<vmem>>, vector<16x128xf32>,
    } else {
    }
    %c0 = arith.constant 0 : index
    %c0_1 = arith.constant 0 : index
    %3 = vector.load %arg8[%c0, %c0_1] : memref<16x128xf32, #tpu.memory_space<vmem>>, vector<16x128xf32>
    %c0_2 = arith.constant 0 : index
    %c0_3 = arith.constant 0 : index
    %4 = vector.load %arg3[%c0_2, %c0_3] : memref<16x128xbf16, #tpu.memory_space<vmem>>, vector<16x128xbf16>
    %c0_4 = arith.constant 0 : index
    %c0_5 = arith.constant 0 : index
    %5 = vector.load %arg4[%c0_4, %c0_5] : memref<128x128xbf16, #tpu.memory_space<vmem>>, vector<128x128xbf16>
    %cst = arith.constant dense<0.000000e+00> : vector<16x128xf32>
    %6 = tpu.matmul %4, %5, %cst {dimension_numbers = #tpu.dot_dimension_numbers<[1], [0], [0], [1], [0, 0, 1, 1], [], []>} : vector<16x128xbf16>, vector<128x128xbf16>, vector<16x128xf32> -> vector<16x128xf32>
    %7 = arith.addf %3, %6 : vector<16x128xf32>
    %c0_6 = arith.constant 0 : index
    %c0_7 = arith.constant 0 : index
    %8 = vector.load %arg8[%c0_6, %c0_7] : memref<16x128xf32, #tpu.memory_space<vmem>>, vector<16x128xf32>
    tpu.vector_store %arg8[%c0_6, %c0_7], %7 {strides = array<i32>} : memref<16x128xf32, #tpu.memory_space<vmem>>, vector<16x128xf32>,
    %c0_i32_8 = arith.constant 0 : i32
    %9 = arith.cmpi eq, %arg2, %c0_i32_8 : i32
    %10 = arith.extui %9 : i1 to i32
    %c0_i32_9 = arith.constant 0 : i32
    %11 = arith.cmpi ne, %10, %c0_i32_9 : i32
    scf.if %11 {
      %c0_10 = arith.constant 0 : index
      %c0_11 = arith.constant 0 : index
      %12 = vector.load %arg8[%c0_10, %c0_11] : memref<16x128xf32, #tpu.memory_space<vmem>>, vector<16x128xf32>
      %c0_12 = arith.constant 0 : index
      %c0_13 = arith.constant 0 : index
      %13 = vector.load %arg5[%c0_12, %c0_13] : memref<1x128xf32, #tpu.memory_space<vmem>>, vector<1x128xf32>
      %14 = vector.broadcast %13 : vector<1x128xf32> to vector<16x128xf32>
      %15 = arith.addf %12, %14 : vector<16x128xf32>
      %c0_14 = arith.constant 0 : index
      %c0_15 = arith.constant 0 : index
      %16 = vector.load %arg6[%c0_14, %c0_15] : memref<16x128xbf16, #tpu.memory_space<vmem>>, vector<16x128xbf16>
      %17 = arith.extf %16 : vector<16x128xbf16> to vector<16x128xf32>
      %18 = arith.addf %15, %17 : vector<16x128xf32>
      %19 = arith.truncf %18 : vector<16x128xf32> to vector<16x128xbf16>
      %c0_16 = arith.constant 0 : index
      %c0_17 = arith.constant 0 : index
      %20 = vector.load %arg7[%c0_16, %c0_17] : memref<16x128xbf16, #tpu.memory_space<vmem>>, vector<16x128xbf16>
      tpu.vector_store %arg7[%c0_16, %c0_17], %19 {strides = array<i32>} : memref<16x128xbf16, #tpu.memory_space<vmem>>, vector<16x128xbf16>,
    } else {
    }
    return
  }
  func.func @transform_0(%arg0: i32, %arg1: i32, %arg2: i32) -> (i32, i32) {
    %c0_i32 = arith.constant 0 : i32
    return %arg0, %arg2 : i32, i32
  }
  func.func @transform_1(%arg0: i32, %arg1: i32, %arg2: i32) -> (i32, i32) {
    %c0_i32 = arith.constant 0 : i32
    return %arg2, %arg1 : i32, i32
  }
  func.func @transform_2(%arg0: i32, %arg1: i32, %arg2: i32) -> (i32, i32) {
    %c0_i32 = arith.constant 0 : i32
    %c0_i32_0 = arith.constant 0 : i32
    return %c0_i32, %arg1 : i32, i32
  }
  func.func @transform_3(%arg0: i32, %arg1: i32, %arg2: i32) -> (i32, i32) {
    %c0_i32 = arith.constant 0 : i32
    return %arg0, %arg1 : i32, i32
  }
  func.func @transform_4(%arg0: i32, %arg1: i32, %arg2: i32) -> (i32, i32) {
    %c0_i32 = arith.constant 0 : i32
    return %arg0, %arg1 : i32, i32
  }
}

module attributes {stable_mosaic.version = 11 : i64} {
  func.func @_ln_matmul_kernel(%arg0: i32, %arg1: i32, %arg2: memref<16x32xbf16, #tpu.memory_space<vmem>>, %arg3: memref<1x32xf32, #tpu.memory_space<vmem>>, %arg4: memref<1x32xf32, #tpu.memory_space<vmem>>, %arg5: memref<32x128xbf16, #tpu.memory_space<vmem>>, %arg6: memref<1x128xf32, #tpu.memory_space<vmem>>, %arg7: memref<16x128xbf16, #tpu.memory_space<vmem>>) attributes {dimension_semantics = [#tpu.dimension_semantics<parallel>, #tpu.dimension_semantics<parallel>], iteration_bounds = array<i64: 1, 1>, scalar_prefetch = 0 : i64, scratch_operands = 0 : i64, tpu.core_type = #tpu.core_type<tc>, window_params = [{transform_indices = @transform_0, window_bounds = array<i64: 16, 32>}, {pipeline_mode = #tpu.pipeline_mode<synchronous>, transform_indices = @transform_1, window_bounds = array<i64: 1, 32>}, {pipeline_mode = #tpu.pipeline_mode<synchronous>, transform_indices = @transform_2, window_bounds = array<i64: 1, 32>}, {transform_indices = @transform_3, window_bounds = array<i64: 32, 128>}, {transform_indices = @transform_4, window_bounds = array<i64: 1, 128>}, {transform_indices = @transform_5, window_bounds = array<i64: 16, 128>}]} {
    %c0 = arith.constant 0 : index
    %c0_0 = arith.constant 0 : index
    %0 = vector.load %arg2[%c0, %c0_0] : memref<16x32xbf16, #tpu.memory_space<vmem>>, vector<16x32xbf16>
    %1 = arith.extf %0 : vector<16x32xbf16> to vector<16x32xf32>
    %cst = arith.constant dense<0.000000e+00> : vector<16xf32>
    %2 = vector.multi_reduction <add>, %1, %cst [1] : vector<16x32xf32> to vector<16xf32>
    %3 = vector.shape_cast %2 : vector<16xf32> to vector<16x1xf32>
    %cst_1 = arith.constant 3.200000e+01 : f32
    %4 = vector.broadcast %cst_1 : f32 to vector<16x1xf32>
    %5 = arith.divf %3, %4 : vector<16x1xf32>
    %6 = vector.broadcast %5 : vector<16x1xf32> to vector<16x32xf32>
    %7 = arith.subf %1, %6 : vector<16x32xf32>
    %8 = arith.mulf %7, %7 : vector<16x32xf32>
    %cst_2 = arith.constant dense<0.000000e+00> : vector<16xf32>
    %9 = vector.multi_reduction <add>, %8, %cst_2 [1] : vector<16x32xf32> to vector<16xf32>
    %10 = vector.shape_cast %9 : vector<16xf32> to vector<16x1xf32>
    %cst_3 = arith.constant 3.200000e+01 : f32
    %11 = vector.broadcast %cst_3 : f32 to vector<16x1xf32>
    %12 = arith.divf %10, %11 : vector<16x1xf32>
    %cst_4 = arith.constant 9.99999974E-6 : f32
    %13 = vector.broadcast %cst_4 : f32 to vector<16x1xf32>
    %14 = arith.addf %12, %13 : vector<16x1xf32>
    %15 = math.rsqrt %14 : vector<16x1xf32>
    %16 = vector.broadcast %15 : vector<16x1xf32> to vector<16x32xf32>
    %17 = arith.mulf %7, %16 : vector<16x32xf32>
    %c0_5 = arith.constant 0 : index
    %c0_6 = arith.constant 0 : index
    %18 = vector.load %arg3[%c0_5, %c0_6] : memref<1x32xf32, #tpu.memory_space<vmem>>, vector<1x32xf32>
    %19 = vector.broadcast %18 : vector<1x32xf32> to vector<16x32xf32>
    %20 = arith.mulf %17, %19 : vector<16x32xf32>
    %c0_7 = arith.constant 0 : index
    %c0_8 = arith.constant 0 : index
    %21 = vector.load %arg4[%c0_7, %c0_8] : memref<1x32xf32, #tpu.memory_space<vmem>>, vector<1x32xf32>
    %22 = vector.broadcast %21 : vector<1x32xf32> to vector<16x32xf32>
    %23 = arith.addf %20, %22 : vector<16x32xf32>
    %24 = arith.truncf %23 : vector<16x32xf32> to vector<16x32xbf16>
    %c0_9 = arith.constant 0 : index
    %c0_10 = arith.constant 0 : index
    %25 = vector.load %arg5[%c0_9, %c0_10] : memref<32x128xbf16, #tpu.memory_space<vmem>>, vector<32x128xbf16>
    %cst_11 = arith.constant dense<0.000000e+00> : vector<16x128xf32>
    %26 = tpu.matmul %24, %25, %cst_11 {dimension_numbers = #tpu.dot_dimension_numbers<[1], [0], [0], [1], [0, 0, 1, 1], [], []>} : vector<16x32xbf16>, vector<32x128xbf16>, vector<16x128xf32> -> vector<16x128xf32>
    %c0_12 = arith.constant 0 : index
    %c0_13 = arith.constant 0 : index
    %27 = vector.load %arg6[%c0_12, %c0_13] : memref<1x128xf32, #tpu.memory_space<vmem>>, vector<1x128xf32>
    %28 = vector.broadcast %27 : vector<1x128xf32> to vector<16x128xf32>
    %29 = arith.addf %26, %28 : vector<16x128xf32>
    %cst_14 = arith.constant 1.702000e+00 : f32
    %30 = vector.broadcast %cst_14 : f32 to vector<16x128xf32>
    %31 = arith.mulf %30, %29 : vector<16x128xf32>
    %32 = arith.negf %31 : vector<16x128xf32>
    %33 = math.exp %32 : vector<16x128xf32>
    %cst_15 = arith.constant 1.000000e+00 : f32
    %34 = vector.broadcast %cst_15 : f32 to vector<16x128xf32>
    %35 = arith.addf %34, %33 : vector<16x128xf32>
    %36 = arith.divf %34, %35 : vector<16x128xf32>
    %37 = arith.mulf %29, %36 : vector<16x128xf32>
    %38 = arith.truncf %37 : vector<16x128xf32> to vector<16x128xbf16>
    %c0_16 = arith.constant 0 : index
    %c0_17 = arith.constant 0 : index
    %39 = vector.load %arg7[%c0_16, %c0_17] : memref<16x128xbf16, #tpu.memory_space<vmem>>, vector<16x128xbf16>
    tpu.vector_store %arg7[%c0_16, %c0_17], %38 {strides = array<i32>} : memref<16x128xbf16, #tpu.memory_space<vmem>>, vector<16x128xbf16>,
    return
  }
  func.func @transform_0(%arg0: i32, %arg1: i32) -> (i32, i32) {
    %c0_i32 = arith.constant 0 : i32
    %c0_i32_0 = arith.constant 0 : i32
    return %arg0, %c0_i32 : i32, i32
  }
  func.func @transform_1(%arg0: i32, %arg1: i32) -> (i32, i32) {
    %c0_i32 = arith.constant 0 : i32
    %c0_i32_0 = arith.constant 0 : i32
    %c0_i32_1 = arith.constant 0 : i32
    return %c0_i32, %c0_i32_0 : i32, i32
  }
  func.func @transform_2(%arg0: i32, %arg1: i32) -> (i32, i32) {
    %c0_i32 = arith.constant 0 : i32
    %c0_i32_0 = arith.constant 0 : i32
    %c0_i32_1 = arith.constant 0 : i32
    return %c0_i32, %c0_i32_0 : i32, i32
  }
  func.func @transform_3(%arg0: i32, %arg1: i32) -> (i32, i32) {
    %c0_i32 = arith.constant 0 : i32
    %c0_i32_0 = arith.constant 0 : i32
    return %c0_i32, %arg1 : i32, i32
  }
  func.func @transform_4(%arg0: i32, %arg1: i32) -> (i32, i32) {
    %c0_i32 = arith.constant 0 : i32
    %c0_i32_0 = arith.constant 0 : i32
    return %c0_i32, %arg1 : i32, i32
  }
  func.func @transform_5(%arg0: i32, %arg1: i32) -> (i32, i32) {
    %c0_i32 = arith.constant 0 : i32
    return %arg0, %arg1 : i32, i32
  }
}

module attributes {stable_mosaic.version = 11 : i64} {
  func.func @_ln_matmul_kernel(%arg0: i32, %arg1: i32, %arg2: memref<8x32xbf16, #tpu.memory_space<vmem>>, %arg3: memref<1x32xf32, #tpu.memory_space<vmem>>, %arg4: memref<1x32xf32, #tpu.memory_space<vmem>>, %arg5: memref<32x128xbf16, #tpu.memory_space<vmem>>, %arg6: memref<1x128xf32, #tpu.memory_space<vmem>>, %arg7: memref<8x128xf32, #tpu.memory_space<vmem>>) attributes {dimension_semantics = [#tpu.dimension_semantics<parallel>, #tpu.dimension_semantics<parallel>], iteration_bounds = array<i64: 1, 1>, scalar_prefetch = 0 : i64, scratch_operands = 0 : i64, tpu.core_type = #tpu.core_type<tc>, window_params = [{transform_indices = @transform_0, window_bounds = array<i64: 8, 32>}, {pipeline_mode = #tpu.pipeline_mode<synchronous>, transform_indices = @transform_1, window_bounds = array<i64: 1, 32>}, {pipeline_mode = #tpu.pipeline_mode<synchronous>, transform_indices = @transform_2, window_bounds = array<i64: 1, 32>}, {transform_indices = @transform_3, window_bounds = array<i64: 32, 128>}, {transform_indices = @transform_4, window_bounds = array<i64: 1, 128>}, {transform_indices = @transform_5, window_bounds = array<i64: 8, 128>}]} {
    %c0 = arith.constant 0 : index
    %c0_0 = arith.constant 0 : index
    %0 = vector.load %arg2[%c0, %c0_0] : memref<8x32xbf16, #tpu.memory_space<vmem>>, vector<8x32xbf16>
    %1 = arith.extf %0 : vector<8x32xbf16> to vector<8x32xf32>
    %cst = arith.constant dense<0.000000e+00> : vector<8xf32>
    %2 = vector.multi_reduction <add>, %1, %cst [1] : vector<8x32xf32> to vector<8xf32>
    %3 = vector.shape_cast %2 : vector<8xf32> to vector<8x1xf32>
    %cst_1 = arith.constant 3.200000e+01 : f32
    %4 = vector.broadcast %cst_1 : f32 to vector<8x1xf32>
    %5 = arith.divf %3, %4 : vector<8x1xf32>
    %6 = vector.broadcast %5 : vector<8x1xf32> to vector<8x32xf32>
    %7 = arith.subf %1, %6 : vector<8x32xf32>
    %8 = arith.mulf %7, %7 : vector<8x32xf32>
    %cst_2 = arith.constant dense<0.000000e+00> : vector<8xf32>
    %9 = vector.multi_reduction <add>, %8, %cst_2 [1] : vector<8x32xf32> to vector<8xf32>
    %10 = vector.shape_cast %9 : vector<8xf32> to vector<8x1xf32>
    %cst_3 = arith.constant 3.200000e+01 : f32
    %11 = vector.broadcast %cst_3 : f32 to vector<8x1xf32>
    %12 = arith.divf %10, %11 : vector<8x1xf32>
    %cst_4 = arith.constant 9.99999974E-6 : f32
    %13 = vector.broadcast %cst_4 : f32 to vector<8x1xf32>
    %14 = arith.addf %12, %13 : vector<8x1xf32>
    %15 = math.rsqrt %14 : vector<8x1xf32>
    %16 = vector.broadcast %15 : vector<8x1xf32> to vector<8x32xf32>
    %17 = arith.mulf %7, %16 : vector<8x32xf32>
    %c0_5 = arith.constant 0 : index
    %c0_6 = arith.constant 0 : index
    %18 = vector.load %arg3[%c0_5, %c0_6] : memref<1x32xf32, #tpu.memory_space<vmem>>, vector<1x32xf32>
    %19 = vector.broadcast %18 : vector<1x32xf32> to vector<8x32xf32>
    %20 = arith.mulf %17, %19 : vector<8x32xf32>
    %c0_7 = arith.constant 0 : index
    %c0_8 = arith.constant 0 : index
    %21 = vector.load %arg4[%c0_7, %c0_8] : memref<1x32xf32, #tpu.memory_space<vmem>>, vector<1x32xf32>
    %22 = vector.broadcast %21 : vector<1x32xf32> to vector<8x32xf32>
    %23 = arith.addf %20, %22 : vector<8x32xf32>
    %24 = arith.truncf %23 : vector<8x32xf32> to vector<8x32xbf16>
    %c0_9 = arith.constant 0 : index
    %c0_10 = arith.constant 0 : index
    %25 = vector.load %arg5[%c0_9, %c0_10] : memref<32x128xbf16, #tpu.memory_space<vmem>>, vector<32x128xbf16>
    %cst_11 = arith.constant dense<0.000000e+00> : vector<8x128xf32>
    %26 = tpu.matmul %24, %25, %cst_11 {dimension_numbers = #tpu.dot_dimension_numbers<[1], [0], [0], [1], [0, 0, 1, 1], [], []>} : vector<8x32xbf16>, vector<32x128xbf16>, vector<8x128xf32> -> vector<8x128xf32>
    %c0_12 = arith.constant 0 : index
    %c0_13 = arith.constant 0 : index
    %27 = vector.load %arg6[%c0_12, %c0_13] : memref<1x128xf32, #tpu.memory_space<vmem>>, vector<1x128xf32>
    %28 = vector.broadcast %27 : vector<1x128xf32> to vector<8x128xf32>
    %29 = arith.addf %26, %28 : vector<8x128xf32>
    %c0_14 = arith.constant 0 : index
    %c0_15 = arith.constant 0 : index
    %30 = vector.load %arg7[%c0_14, %c0_15] : memref<8x128xf32, #tpu.memory_space<vmem>>, vector<8x128xf32>
    tpu.vector_store %arg7[%c0_14, %c0_15], %29 {strides = array<i32>} : memref<8x128xf32, #tpu.memory_space<vmem>>, vector<8x128xf32>,
    return
  }
  func.func @transform_0(%arg0: i32, %arg1: i32) -> (i32, i32) {
    %c0_i32 = arith.constant 0 : i32
    %c0_i32_0 = arith.constant 0 : i32
    return %arg0, %c0_i32 : i32, i32
  }
  func.func @transform_1(%arg0: i32, %arg1: i32) -> (i32, i32) {
    %c0_i32 = arith.constant 0 : i32
    %c0_i32_0 = arith.constant 0 : i32
    %c0_i32_1 = arith.constant 0 : i32
    return %c0_i32, %c0_i32_0 : i32, i32
  }
  func.func @transform_2(%arg0: i32, %arg1: i32) -> (i32, i32) {
    %c0_i32 = arith.constant 0 : i32
    %c0_i32_0 = arith.constant 0 : i32
    %c0_i32_1 = arith.constant 0 : i32
    return %c0_i32, %c0_i32_0 : i32, i32
  }
  func.func @transform_3(%arg0: i32, %arg1: i32) -> (i32, i32) {
    %c0_i32 = arith.constant 0 : i32
    %c0_i32_0 = arith.constant 0 : i32
    return %c0_i32, %arg1 : i32, i32
  }
  func.func @transform_4(%arg0: i32, %arg1: i32) -> (i32, i32) {
    %c0_i32 = arith.constant 0 : i32
    %c0_i32_0 = arith.constant 0 : i32
    return %c0_i32, %arg1 : i32, i32
  }
  func.func @transform_5(%arg0: i32, %arg1: i32) -> (i32, i32) {
    %c0_i32 = arith.constant 0 : i32
    return %arg0, %arg1 : i32, i32
  }
}

</mosaic_0001>

<llo_original>
// kernel: visual_transformer_forward.15
$region0: #{visual_transformer_forward.15}
  #allocation0 [shape = 'u32[]', space=smem, size = 0x4, offset = 0x4, fixed_abs, tag = 'smem constant byte address 0x4 - core index']
  #allocation1 [shape = 'u32[144,128]{1,0:T(1,128)}', space=vmem, size = 0x12000, scoped, tag = 'internal scratch']
  %s0 = inlined_call_operand.vmem [shape: bf16[16,32], index: 0, kind: input, shape index: {}]
  %s1 = inlined_call_operand.vmem [shape: f32[1,32], index: 1, kind: input, shape index: {}]
  %s2 = inlined_call_operand.vmem [shape: f32[1,32], index: 2, kind: input, shape index: {}]
  %s3 = inlined_call_operand.vmem [shape: bf16[32,128], index: 3, kind: input, shape index: {}]
  %s4 = inlined_call_operand.vmem [shape: f32[1,128], index: 4, kind: input, shape index: {}]
  %s5 = inlined_call_operand.vmem [shape: bf16[16,128], index: 5, kind: output, shape index: {}]
  %s6 = sld [smem:[#allocation0]]
  $region30: #{visual_transformer_forward.15} parent=0
    _
  %s8 = ssub.s32 1, %s6
  %s9 = scalar_select 0, %s8, %s6
  // Predicated region
  $region2: #{visual_transformer_forward.15} parent=0 // pred_check
    _
  $region3: #{visual_transformer_forward.15} parent=0 // pred_check_branch
    %11 = sbr.rel (0) target = $region5
  $region4: #{visual_transformer_forward.15} parent=0 // pred_region
    _
  $region5: #{visual_transformer_forward.15} parent=0 // pred_fallthru
    _
  // Predicated region
  $region6: #{visual_transformer_forward.15} parent=0 // pred_check
    _
  $region7: #{visual_transformer_forward.15} parent=0 // pred_check_branch
    %13 = sbr.rel (0) target = $region9
  $region8: #{visual_transformer_forward.15} parent=0 // pred_region
    _
  $region9: #{visual_transformer_forward.15} parent=0 // pred_fallthru
    _
  // Predicated region
  $region10: #{visual_transformer_forward.15} parent=0 // pred_check
    _
  $region11: #{visual_transformer_forward.15} parent=0 // pred_check_branch
    %15 = sbr.rel (0) target = $region13
  $region12: #{visual_transformer_forward.15} parent=0 // pred_region
    _
  $region13: #{visual_transformer_forward.15} parent=0 // pred_fallthru
    _
  // Predicated region
  $region14: #{visual_transformer_forward.15} parent=0 // pred_check
    _
  $region15: #{visual_transformer_forward.15} parent=0 // pred_check_branch
    %17 = sbr.rel (0) target = $region17
  $region16: #{visual_transformer_forward.15} parent=0 // pred_region
    _
  $region17: #{visual_transformer_forward.15} parent=0 // pred_fallthru
    _
  // Predicated region
  $region18: #{visual_transformer_forward.15} parent=0 // pred_check
    _
  $region19: #{visual_transformer_forward.15} parent=0 // pred_check_branch
    %19 = sbr.rel (0) target = $region21
  $region20: #{visual_transformer_forward.15} parent=0 // pred_region
    _
  $region21: #{visual_transformer_forward.15} parent=0 // pred_fallthru
    _
  %v21 = vld [vmem:[%s0] sm:$0xf]
  %v22 = vld [vmem:[%s0 + $0x4] sm:$0xf]
  %v23 = vunpack.c.l.bf16 %v21
  %v24 = vunpack.c.l.bf16 %v22
  %vm25 = vcmask 261120
  %v26 = vsel %vm25, %v23, 0.0
  %27 = vadd.xlane.f32.xlu0 %v26
  %v28 = vpop.xlane.xlu0 %27
  %v29 = vsel %vm25, %v24, 0.0
  %30 = vadd.xlane.f32.xlu0 %v29
  %v31 = vpop.xlane.xlu0 %30
  %v32 = vrcp.pop 32.0
  %v33 = vmul.f32 %v28, %v32
  %v34 = vmul.f32 %v31, %v32
  %v35 = vsub.f32 %v23, %v33
  %v36 = vsub.f32 %v24, %v34
  %v37 = vmul.f32 %v35, %v35
  %v38 = vmul.f32 %v36, %v36
  %v39 = vsel %vm25, %v37, 0.0
  %40 = vadd.xlane.f32.xlu0 %v39
  %v41 = vpop.xlane.xlu0 %40
  %v42 = vsel %vm25, %v38, 0.0
  %43 = vadd.xlane.f32.xlu0 %v42
  %v44 = vpop.xlane.xlu0 %43
  %v45 = vmul.f32 %v41, %v32
  %v46 = vmul.f32 %v44, %v32
  %v47 = vadd.f32 %v45, 1e-05
  %v48 = vadd.f32 %v46, 1e-05
  %v49 = vrsqrt.pop %v47
  %v50 = vrsqrt.pop %v48
  %v51 = vmul.f32 %v35, %v49
  %v52 = vmul.f32 %v36, %v50
  %v53 = vld [vmem:[%s1] sm:$0x1]
  %v55 = vlaneseq
  %v56 = vshrl.u32 %v55, 7
  %v57 = vsub.s32 0, %v56
  %v58 = vrot.slane %v53, %v57
  %v60 = vmul.f32 %v51, %v58
  %v61 = vmul.f32 %v52, %v58
  %v62 = vld [vmem:[%s2] sm:$0x1]
  %v64 = vlaneseq
  %v65 = vshrl.u32 %v64, 7
  %v66 = vsub.s32 0, %v65
  %v67 = vrot.slane %v62, %v66
  %v69 = vadd.f32 %v60, %v67
  %v70 = vadd.f32 %v61, %v67
  %v71 = vpack.c.bf16 %v70, %v69
  %v72 = vld [vmem:[%s3] sm:$0xf]
  %v73 = vld [vmem:[%s3 + $0x4] sm:$0xf]
  %v74 = vld [vmem:[%s3 + $0x8] sm:$0xf]
  %v75 = vld [vmem:[%s3 + $0xc] sm:$0xf]
  %v76 = vld [vmem:[%s4] sm:$0x1]
  %v78 = vlaneseq
  %v79 = vshrl.u32 %v78, 7
  %v80 = vsub.s32 0, %v79
  %v81 = vrot.slane %v76, %v80
  %v87 = vunpack.c.l.b16 %v72
  %v88 = vunpack.c.l.b16 %v73
  %v89 = vunpack.c.l.b16 %v74
  %v90 = vunpack.c.l.b16 %v75
  %v91 = vpack.c.b16 %v88, %v87
  %v92 = vpack.c.b16 %v90, %v89
  %v96 = vsel %vm25, %v71, 0
  %98 = vmatprep.subr.bf16.mxu0 0
  %99 = vmatpush1.bf16.msra.mxu0 %v91
  %100 = vmatprep.subr.bf16.mxu0 0
  %101 = vmatpush1.bf16.msra.mxu0 %v92
  %102 = vmatprep.subr.bf16.mxu0 0
  %103 = vmatpush1.bf16.msra.mxu0 0
  %104 = vmatprep.subr.bf16.mxu0 0
  %105 = vmatpush1.bf16.msra.mxu0 0
  %106 = vmatprep.subr.bf16.mxu0 0
  %107 = vmatpush1.bf16.msra.mxu0 0
  %108 = vmatprep.subr.bf16.mxu0 0
  %109 = vmatpush1.bf16.msra.mxu0 0
  %110 = vmatprep.subr.bf16.mxu0 0
  %111 = vmatpush1.bf16.msra.mxu0 0
  %112 = vmatprep.subr.bf16.mxu0 0
  %113 = vmatpush1.bf16.msra.mxu0 0
  %114 = vmatprep.subr.bf16.mxu0 0
  %115 = vmatpush1.bf16.msra.mxu0 0
  %116 = vmatprep.subr.bf16.mxu0 0
  %117 = vmatpush1.bf16.msra.mxu0 0
  %118 = vmatprep.subr.bf16.mxu0 0
  %119 = vmatpush1.bf16.msra.mxu0 0
  %120 = vmatprep.subr.bf16.mxu0 0
  %121 = vmatpush1.bf16.msra.mxu0 0
  %122 = vmatprep.subr.bf16.mxu0 0
  %123 = vmatpush1.bf16.msra.mxu0 0
  %124 = vmatprep.subr.bf16.mxu0 0
  %125 = vmatpush1.bf16.msra.mxu0 0
  %126 = vmatprep.subr.bf16.mxu0 0
  %127 = vmatpush1.bf16.msra.mxu0 0
  %128 = vmatprep.subr.bf16.mxu0 0
  %129 = vmatpush1.bf16.msra.mxu0 0
  %130 = vmatprep.mubr.bf16.mxu0 0
  %131 = vmatmul.mubr.bf16.gmra.mrb[0].mxu0 %v96
  %v132 = vpop.f32.mrb[0].mxu0
  %v133 = vadd.f32 %v81, %v132
  %v134 = vpop.f32.mrb[0].mxu0
  %v135 = vpop.f32.mrb[0].mxu0
  %v136 = vadd.f32 %v81, %v135
  %v137 = vpop.f32.mrb[0].mxu0
  %138 = vdwg.mxu0
  %v139 = vpack.c.bf16 %v136, %v133
  %v141 = vunpack.c.l.b16 %v139
  %v142 = vunpack.c.h.b16 %v139
  %v143 = vpack.c.b16 %v141, %v141
  %v144 = vpack.c.b16 %v142, %v142
  %147 = vst [vmem:[%s5] sm:$0xf] %v143
  %148 = vst [vmem:[%s5 + $0x4] sm:$0xf] %v144
  // Predicated region
  $region22: #{visual_transformer_forward.15} parent=0 // pred_check
    _
  $region23: #{visual_transformer_forward.15} parent=0 // pred_check_branch
    %150 = sbr.rel (0) target = $region25
  $region24: #{visual_transformer_forward.15} parent=0 // pred_region
    _
  $region25: #{visual_transformer_forward.15} parent=0 // pred_fallthru
    _
  // Predicated region
  $region26: #{visual_transformer_forward.15} parent=0 // pred_check
    _
  $region27: #{visual_transformer_forward.15} parent=0 // pred_check_branch
    %152 = sbr.rel (0) target = $region29
  $region28: #{visual_transformer_forward.15} parent=0 // pred_region
    _
  $region29: #{visual_transformer_forward.15} parent=0 // pred_fallthru
    _

// kernel: visual_transformer_forward.14
$region0: #{visual_transformer_forward.14}
  #allocation0 [shape = 'u32[]', space=smem, size = 0x4, offset = 0x4, fixed_abs, tag = 'smem constant byte address 0x4 - core index']
  #allocation1 [shape = 'u32[144,128]{1,0:T(1,128)}', space=vmem, size = 0x12000, scoped, tag = 'internal scratch']
  %s0 = inlined_call_operand.vmem [shape: bf16[16,32], index: 0, kind: input, shape index: {}]
  %s1 = inlined_call_operand.vmem [shape: f32[1,32], index: 1, kind: input, shape index: {}]
  %s2 = inlined_call_operand.vmem [shape: f32[1,32], index: 2, kind: input, shape index: {}]
  %s3 = inlined_call_operand.vmem [shape: bf16[16,32], index: 3, kind: output, shape index: {}]
  %s4 = sld [smem:[#allocation0]]
  $region22: #{visual_transformer_forward.14} parent=0
    _
  %s6 = ssub.s32 1, %s4
  %s7 = scalar_select 0, %s6, %s4
  // Predicated region
  $region2: #{visual_transformer_forward.14} parent=0 // pred_check
    _
  $region3: #{visual_transformer_forward.14} parent=0 // pred_check_branch
    %9 = sbr.rel (0) target = $region5
  $region4: #{visual_transformer_forward.14} parent=0 // pred_region
    _
  $region5: #{visual_transformer_forward.14} parent=0 // pred_fallthru
    _
  // Predicated region
  $region6: #{visual_transformer_forward.14} parent=0 // pred_check
    _
  $region7: #{visual_transformer_forward.14} parent=0 // pred_check_branch
    %11 = sbr.rel (0) target = $region9
  $region8: #{visual_transformer_forward.14} parent=0 // pred_region
    _
  $region9: #{visual_transformer_forward.14} parent=0 // pred_fallthru
    _
  // Predicated region
  $region10: #{visual_transformer_forward.14} parent=0 // pred_check
    _
  $region11: #{visual_transformer_forward.14} parent=0 // pred_check_branch
    %13 = sbr.rel (0) target = $region13
  $region12: #{visual_transformer_forward.14} parent=0 // pred_region
    _
  $region13: #{visual_transformer_forward.14} parent=0 // pred_fallthru
    _
  %v14 = vld [vmem:[%s0] sm:$0xf]
  %v15 = vld [vmem:[%s0 + $0x4] sm:$0xf]
  %v16 = vunpack.c.l.bf16 %v14
  %v17 = vunpack.c.l.bf16 %v15
  %vm18 = vcmask 261120
  %v19 = vsel %vm18, %v16, 0.0
  %20 = vadd.xlane.f32.xlu0 %v19
  %v21 = vpop.xlane.xlu0 %20
  %v22 = vsel %vm18, %v17, 0.0
  %23 = vadd.xlane.f32.xlu0 %v22
  %v24 = vpop.xlane.xlu0 %23
  %v25 = vrcp.pop 32.0
  %v26 = vmul.f32 %v21, %v25
  %v27 = vmul.f32 %v24, %v25
  %v28 = vsub.f32 %v16, %v26
  %v29 = vsub.f32 %v17, %v27
  %v30 = vmul.f32 %v28, %v28
  %v31 = vmul.f32 %v29, %v29
  %v32 = vsel %vm18, %v30, 0.0
  %33 = vadd.xlane.f32.xlu0 %v32
  %v34 = vpop.xlane.xlu0 %33
  %v35 = vsel %vm18, %v31, 0.0
  %36 = vadd.xlane.f32.xlu0 %v35
  %v37 = vpop.xlane.xlu0 %36
  %v38 = vmul.f32 %v34, %v25
  %v39 = vmul.f32 %v37, %v25
  %v40 = vadd.f32 %v38, 1e-05
  %v41 = vadd.f32 %v39, 1e-05
  %v42 = vrsqrt.pop %v40
  %v43 = vrsqrt.pop %v41
  %v44 = vmul.f32 %v28, %v42
  %v45 = vmul.f32 %v29, %v43
  %v46 = vld [vmem:[%s1] sm:$0x1]
  %v48 = vlaneseq
  %v49 = vshrl.u32 %v48, 7
  %v50 = vsub.s32 0, %v49
  %v51 = vrot.slane %v46, %v50
  %v53 = vmul.f32 %v44, %v51
  %v54 = vmul.f32 %v45, %v51
  %v55 = vld [vmem:[%s2] sm:$0x1]
  %v57 = vlaneseq
  %v58 = vshrl.u32 %v57, 7
  %v59 = vsub.s32 0, %v58
  %v60 = vrot.slane %v55, %v59
  %v62 = vadd.f32 %v53, %v60
  %v63 = vadd.f32 %v54, %v60
  %v64 = vpack.c.bf16 %v63, %v62
  %v66 = vunpack.c.l.b16 %v64
  %v67 = vunpack.c.h.b16 %v64
  %v68 = vpack.c.b16 %v66, %v66
  %v69 = vpack.c.b16 %v67, %v67
  %vm72 = vcmask 257024
  %73 = vst.msk [vmem:[%s3] sm:$0xf] %vm72, %v68
  %74 = vst.msk [vmem:[%s3 + $0x4] sm:$0xf] %vm72, %v69
  // Predicated region
  $region14: #{visual_transformer_forward.14} parent=0 // pred_check
    _
  $region15: #{visual_transformer_forward.14} parent=0 // pred_check_branch
    %76 = sbr.rel (0) target = $region17
  $region16: #{visual_transformer_forward.14} parent=0 // pred_region
    _
  $region17: #{visual_transformer_forward.14} parent=0 // pred_fallthru
    _
  // Predicated region
  $region18: #{visual_transformer_forward.14} parent=0 // pred_check
    _
  $region19: #{visual_transformer_forward.14} parent=0 // pred_check_branch
    %78 = sbr.rel (0) target = $region21
  $region20: #{visual_transformer_forward.14} parent=0 // pred_region
    _
  $region21: #{visual_transformer_forward.14} parent=0 // pred_fallthru
    _

// kernel: visual_transformer_forward.13
$region0: #{visual_transformer_forward.13}
  #allocation0 [shape = 'u32[]', space=smem, size = 0x4, offset = 0x4, fixed_abs, tag = 'smem constant byte address 0x4 - core index']
  #allocation1 [shape = 'u32[144,128]{1,0:T(1,128)}', space=vmem, size = 0x12000, scoped, tag = 'internal scratch']
  #allocation2 [shape = 'f32[8,128]{1,0:T(8,128)}', space=vmem, size = 0x1000, scoped, tag = 'scratch operand']
  %s0 = inlined_call_operand.vmem [shape: bf16[8,256], index: 0, kind: input, shape index: {}]
  %s1 = inlined_call_operand.vmem [shape: bf16[256,128], index: 1, kind: input, shape index: {}]
  %s2 = inlined_call_operand.vmem [shape: f32[1,128], index: 2, kind: input, shape index: {}]
  %s3 = inlined_call_operand.vmem [shape: bf16[8,128], index: 3, kind: output, shape index: {}]
  %s4 = sld [smem:[#allocation0]]
  $region30: #{visual_transformer_forward.13} parent=0
    _
  %s6 = ssub.s32 1, %s4
  %s7 = scalar_select 0, %s6, %s4
  // Predicated region
  $region2: #{visual_transformer_forward.13} parent=0 // pred_check
    _
  $region3: #{visual_transformer_forward.13} parent=0 // pred_check_branch
    %9 = sbr.rel (0) target = $region5
  $region4: #{visual_transformer_forward.13} parent=0 // pred_region
    _
  $region5: #{visual_transformer_forward.13} parent=0 // pred_fallthru
    _
  // Predicated region
  $region6: #{visual_transformer_forward.13} parent=0 // pred_check
    _
  $region7: #{visual_transformer_forward.13} parent=0 // pred_check_branch
    %11 = sbr.rel (0) target = $region9
  $region8: #{visual_transformer_forward.13} parent=0 // pred_region
    _
  $region9: #{visual_transformer_forward.13} parent=0 // pred_fallthru
    _
  // Predicated region
  $region10: #{visual_transformer_forward.13} parent=0 // pred_check
    _
  $region11: #{visual_transformer_forward.13} parent=0 // pred_check_branch
    %13 = sbr.rel (0) target = $region13
  $region12: #{visual_transformer_forward.13} parent=0 // pred_region
    _
  $region13: #{visual_transformer_forward.13} parent=0 // pred_fallthru
    _
  %p15 = scmp.eq.s32.totalorder 0, 0
  // Predicated region
  $region14: #{visual_transformer_forward.13} parent=0 // pred_check
    %p16 = pneg %p15
  $region15: #{visual_transformer_forward.13} parent=0 // pred_check_branch
    %18 = sbr.rel (%p16) target = $region17
  $region16: #{visual_transformer_forward.13} parent=0 // pred_region
    %19 = vst [vmem:[#allocation2] sm:$0xff] 0.0
  $region17: #{visual_transformer_forward.13} parent=0 // pred_fallthru
    _
  %v20 = vld [vmem:[#allocation2] sm:$0xff]
  %v21 = vld [vmem:[%s0] sm:$0xff]
  %v22 = vld [vmem:[%s1] sm:$0xf]
  %v23 = vld [vmem:[%s1 + $0x4] sm:$0xf]
  %v24 = vld [vmem:[%s1 + $0x8] sm:$0xf]
  %v25 = vld [vmem:[%s1 + $0xc] sm:$0xf]
  %v26 = vld [vmem:[%s1 + $0x10] sm:$0xf]
  %v27 = vld [vmem:[%s1 + $0x14] sm:$0xf]
  %v28 = vld [vmem:[%s1 + $0x18] sm:$0xf]
  %v29 = vld [vmem:[%s1 + $0x1c] sm:$0xf]
  %v30 = vld [vmem:[%s1 + $0x20] sm:$0xf]
  %v31 = vld [vmem:[%s1 + $0x24] sm:$0xf]
  %v32 = vld [vmem:[%s1 + $0x28] sm:$0xf]
  %v33 = vld [vmem:[%s1 + $0x2c] sm:$0xf]
  %v34 = vld [vmem:[%s1 + $0x30] sm:$0xf]
  %v35 = vld [vmem:[%s1 + $0x34] sm:$0xf]
  %v36 = vld [vmem:[%s1 + $0x38] sm:$0xf]
  %v37 = vld [vmem:[%s1 + $0x3c] sm:$0xf]
  %v38 = vld [vmem:[%s1 + $0x40] sm:$0xf]
  %v39 = vld [vmem:[%s1 + $0x44] sm:$0xf]
  %v40 = vld [vmem:[%s1 + $0x48] sm:$0xf]
  %v41 = vld [vmem:[%s1 + $0x4c] sm:$0xf]
  %v42 = vld [vmem:[%s1 + $0x50] sm:$0xf]
  %v43 = vld [vmem:[%s1 + $0x54] sm:$0xf]
  %v44 = vld [vmem:[%s1 + $0x58] sm:$0xf]
  %v45 = vld [vmem:[%s1 + $0x5c] sm:$0xf]
  %v46 = vld [vmem:[%s1 + $0x60] sm:$0xf]
  %v47 = vld [vmem:[%s1 + $0x64] sm:$0xf]
  %v48 = vld [vmem:[%s1 + $0x68] sm:$0xf]
  %v49 = vld [vmem:[%s1 + $0x6c] sm:$0xf]
  %v50 = vld [vmem:[%s1 + $0x70] sm:$0xf]
  %v51 = vld [vmem:[%s1 + $0x74] sm:$0xf]
  %v52 = vld [vmem:[%s1 + $0x78] sm:$0xf]
  %v53 = vld [vmem:[%s1 + $0x7c] sm:$0xf]
  %v55 = vunpack.c.l.b16 %v21
  %v56 = vunpack.c.h.b16 %v21
  %v57 = vpack.c.b16 %v55, %v55
  %v58 = vpack.c.b16 %v56, %v56
  %v93 = vunpack.c.l.b16 %v22
  %v94 = vunpack.c.l.b16 %v23
  %v95 = vunpack.c.l.b16 %v24
  %v96 = vunpack.c.l.b16 %v25
  %v97 = vunpack.c.l.b16 %v26
  %v98 = vunpack.c.l.b16 %v27
  %v99 = vunpack.c.l.b16 %v28
  %v100 = vunpack.c.l.b16 %v29
  %v101 = vunpack.c.l.b16 %v30
  %v102 = vunpack.c.l.b16 %v31
  %v103 = vunpack.c.l.b16 %v32
  %v104 = vunpack.c.l.b16 %v33
  %v105 = vunpack.c.l.b16 %v34
  %v106 = vunpack.c.l.b16 %v35
  %v107 = vunpack.c.l.b16 %v36
  %v108 = vunpack.c.l.b16 %v37
  %v109 = vunpack.c.l.b16 %v38
  %v110 = vunpack.c.l.b16 %v39
  %v111 = vunpack.c.l.b16 %v40
  %v112 = vunpack.c.l.b16 %v41
  %v113 = vunpack.c.l.b16 %v42
  %v114 = vunpack.c.l.b16 %v43
  %v115 = vunpack.c.l.b16 %v44
  %v116 = vunpack.c.l.b16 %v45
  %v117 = vunpack.c.l.b16 %v46
  %v118 = vunpack.c.l.b16 %v47
  %v119 = vunpack.c.l.b16 %v48
  %v120 = vunpack.c.l.b16 %v49
  %v121 = vunpack.c.l.b16 %v50
  %v122 = vunpack.c.l.b16 %v51
  %v123 = vunpack.c.l.b16 %v52
  %v124 = vunpack.c.l.b16 %v53
  %v125 = vpack.c.b16 %v94, %v93
  %v126 = vpack.c.b16 %v96, %v95
  %v127 = vpack.c.b16 %v98, %v97
  %v128 = vpack.c.b16 %v100, %v99
  %v129 = vpack.c.b16 %v102, %v101
  %v130 = vpack.c.b16 %v104, %v103
  %v131 = vpack.c.b16 %v106, %v105
  %v132 = vpack.c.b16 %v108, %v107
  %v133 = vpack.c.b16 %v110, %v109
  %v134 = vpack.c.b16 %v112, %v111
  %v135 = vpack.c.b16 %v114, %v113
  %v136 = vpack.c.b16 %v116, %v115
  %v137 = vpack.c.b16 %v118, %v117
  %v138 = vpack.c.b16 %v120, %v119
  %v139 = vpack.c.b16 %v122, %v121
  %v140 = vpack.c.b16 %v124, %v123
  %157 = vmatprep.subr.bf16.mxu0 0
  %158 = vmatpush1.bf16.msra.mxu0 %v125
  %159 = vmatprep.subr.bf16.mxu0 0
  %160 = vmatpush1.bf16.msra.mxu0 %v126
  %161 = vmatprep.subr.bf16.mxu0 0
  %162 = vmatpush1.bf16.msra.mxu0 %v127
  %163 = vmatprep.subr.bf16.mxu0 0
  %164 = vmatpush1.bf16.msra.mxu0 %v128
  %165 = vmatprep.subr.bf16.mxu0 0
  %166 = vmatpush1.bf16.msra.mxu0 %v129
  %167 = vmatprep.subr.bf16.mxu0 0
  %168 = vmatpush1.bf16.msra.mxu0 %v130
  %169 = vmatprep.subr.bf16.mxu0 0
  %170 = vmatpush1.bf16.msra.mxu0 %v131
  %171 = vmatprep.subr.bf16.mxu0 0
  %172 = vmatpush1.bf16.msra.mxu0 %v132
  %173 = vmatprep.subr.bf16.mxu0 0
  %174 = vmatpush1.bf16.msra.mxu0 %v133
  %175 = vmatprep.subr.bf16.mxu0 0
  %176 = vmatpush1.bf16.msra.mxu0 %v134
  %177 = vmatprep.subr.bf16.mxu0 0
  %178 = vmatpush1.bf16.msra.mxu0 %v135
  %179 = vmatprep.subr.bf16.mxu0 0
  %180 = vmatpush1.bf16.msra.mxu0 %v136
  %181 = vmatprep.subr.bf16.mxu0 0
  %182 = vmatpush1.bf16.msra.mxu0 %v137
  %183 = vmatprep.subr.bf16.mxu0 0
  %184 = vmatpush1.bf16.msra.mxu0 %v138
  %185 = vmatprep.subr.bf16.mxu0 0
  %186 = vmatpush1.bf16.msra.mxu0 %v139
  %187 = vmatprep.subr.bf16.mxu0 0
  %188 = vmatpush1.bf16.msra.mxu0 %v140
  %189 = vmatprep.mubr.bf16.mxu0 %v58
  %190 = vmatmul.mubr.bf16.gmra.mrb[0].mxu0 %v57
  %v191 = vpop.f32.mrb[0].mxu0
  %v192 = vadd.f32 0.0, %v191
  %v193 = vpop.f32.mrb[0].mxu0
  %v194 = vpop.f32.mrb[0].mxu0
  %v195 = vpop.f32.mrb[0].mxu0
  %196 = vdwg.mxu0
  %v197 = vadd.f32 %v20, %v192
  %198 = vst [vmem:[#allocation2] sm:$0xff] %v197
  // Predicated region
  $region18: #{visual_transformer_forward.13} parent=0 // pred_check
    %p199 = pneg %p15
  $region19: #{visual_transformer_forward.13} parent=0 // pred_check_branch
    %201 = sbr.rel (%p199) target = $region21
  $region20: #{visual_transformer_forward.13} parent=0 // pred_region
    %v202 = vld [vmem:[#allocation2] sm:$0xff]
    %v203 = vld [vmem:[%s2] sm:$0x1]
    %v205 = vlaneseq
    %v206 = vshrl.u32 %v205, 7
    %v207 = vsub.s32 0, %v206
    %v208 = vrot.slane %v203, %v207
    %v210 = vadd.f32 %v202, %v208
    %v211 = vpack.c.bf16 %v210, %v210
    %212 = vst [vmem:[%s3] sm:$0xf] %v211
  $region21: #{visual_transformer_forward.13} parent=0 // pred_fallthru
    _
  // Predicated region
  $region22: #{visual_transformer_forward.13} parent=0 // pred_check
    _
  $region23: #{visual_transformer_forward.13} parent=0 // pred_check_branch
    %214 = sbr.rel (0) target = $region25
  $region24: #{visual_transformer_forward.13} parent=0 // pred_region
    _
  $region25: #{visual_transformer_forward.13} parent=0 // pred_fallthru
    _
  // Predicated region
  $region26: #{visual_transformer_forward.13} parent=0 // pred_check
    _
  $region27: #{visual_transformer_forward.13} parent=0 // pred_check_branch
    %216 = sbr.rel (0) target = $region29
  $region28: #{visual_transformer_forward.13} parent=0 // pred_region
    _
  $region29: #{visual_transformer_forward.13} parent=0 // pred_fallthru
    _

// kernel: visual_transformer_forward.16
$region0: #{visual_transformer_forward.16}
  #allocation0 [shape = 'u32[]', space=smem, size = 0x4, offset = 0x4, fixed_abs, tag = 'smem constant byte address 0x4 - core index']
  #allocation1 [shape = 'u32[144,128]{1,0:T(1,128)}', space=vmem, size = 0x12000, scoped, tag = 'internal scratch']
  %s0 = inlined_call_operand.vmem [shape: bf16[2,5,96], index: 0, kind: input, shape index: {}]
  %s1 = inlined_call_operand.vmem [shape: bf16[2,5,32], index: 1, kind: output, shape index: {}]
  %s2 = sld [smem:[#allocation0]]
  $region37: #{visual_transformer_forward.16} parent=0
    _
  %s4 = ssub.s32 1, %s2
  %s5 = scalar_select 0, %s4, %s2
  loop: start=0, step=1, limit=4
  $region2: #{visual_transformer_forward.16} parent=0 // loop_pre_header
    _
  $region3: #{visual_transformer_forward.16} parent=0 // loop_header
    %s7 = sphi 0, %s11
    %p8 = scmp.ge.s32.totalorder %s7, 4
    %s17 = sphi 0, %s19
    %s20 = sphi 0, %s17
    %s21 = sphi 0, %s20
    %s37 = sphi 0, %s21
    %s43 = sphi 0, %s45
    %s46 = sphi 0, %s43
    %s47 = sphi 0, %s46
    %s63 = sphi 0, %s47
  $region4: #{visual_transformer_forward.16} parent=0 // loop_header_branch
    %10 = sbr.rel (%p8) target = $region8
  $region5: #{visual_transformer_forward.16} parent=0 // loop_body
    %s12 = ssub.s32 %s7, 1
    %s13 = ssub.s32 %s7, 2
    %s14 = sadd.s32 %s7, 1
    %s15 = ssub.s32 %s7, %s14
    %p16 = scmp.eq.s32.totalorder %s15, 0
    %s18 = sadd.s32 %s17, 1
    %s19 = scalar_select %p16, %s17, %s18
    %p22 = pneg %p16
    %p23 = scmp.eq.s32.totalorder %s7, 1
    %p24 = por %p22, %p23
    %p25 = scmp.ne.s32.totalorder %s17, %s20
    %p26 = scmp.eq.s32.totalorder %s7, 0
    %p27 = por %p25, %p26
    %p28 = scmp.ne.s32.totalorder %s17, %s20
    %p29 = scmp.eq.s32.totalorder %s12, 1
    %p30 = por %p28, %p29
    %p31 = scmp.ne.s32.totalorder %s20, %s21
    %p32 = scmp.eq.s32.totalorder %s12, 0
    %p33 = por %p31, %p32
    %p34 = scmp.ne.s32.totalorder %s20, %s21
    %p35 = scmp.eq.s32.totalorder %s13, 1
    %p36 = por %p34, %p35
    %p38 = scmp.ne.s32.totalorder %s21, %s37
    %p39 = scmp.eq.s32.totalorder %s13, 0
    %p40 = por %p38, %p39
    %s41 = ssub.s32 %s7, %s14
    %p42 = scmp.eq.s32.totalorder %s41, 0
    %s44 = sadd.s32 %s43, 1
    %s45 = scalar_select %p42, %s43, %s44
    %p48 = pneg %p42
    %p49 = scmp.eq.s32.totalorder %s7, 1
    %p50 = por %p48, %p49
    %p51 = scmp.ne.s32.totalorder %s43, %s46
    %p52 = scmp.eq.s32.totalorder %s7, 0
    %p53 = por %p51, %p52
    %p54 = scmp.ne.s32.totalorder %s43, %s46
    %p55 = scmp.eq.s32.totalorder %s12, 1
    %p56 = por %p54, %p55
    %p57 = scmp.ne.s32.totalorder %s46, %s47
    %p58 = scmp.eq.s32.totalorder %s12, 0
    %p59 = por %p57, %p58
    %p60 = scmp.ne.s32.totalorder %s46, %s47
    %p61 = scmp.eq.s32.totalorder %s13, 1
    %p62 = por %p60, %p61
    %p64 = scmp.ne.s32.totalorder %s47, %s63
    %p65 = scmp.eq.s32.totalorder %s13, 0
    %p66 = por %p64, %p65
    %p67 = scmp.le.s32.totalorder 1, %s7
    %p68 = scmp.lt.s32.totalorder %s7, 3
    %p69 = pnand %p67, %p68
    %p70 = pneg %p69
    // Predicated region
    $region9: #{visual_transformer_forward.16} parent=5 // pred_check
      _
    $region10: #{visual_transformer_forward.16} parent=5 // pred_check_branch
      %72 = sbr.rel (%p69) target = $region12
    $region11: #{visual_transformer_forward.16} parent=5 // pred_region
      %s73 = ssub.s32 %s7, 1
    $region12: #{visual_transformer_forward.16} parent=5 // pred_fallthru
      _
    %p74 = scmp.lt.s32.totalorder %s7, 2
    // Predicated region
    $region13: #{visual_transformer_forward.16} parent=5 // pred_check
      %p75 = pneg %p74
    $region14: #{visual_transformer_forward.16} parent=5 // pred_check_branch
      %77 = sbr.rel (%p75) target = $region16
    $region15: #{visual_transformer_forward.16} parent=5 // pred_region
      // Predicated region
      $region17: #{visual_transformer_forward.16} parent=15 // pred_check
        %p78 = pneg %p27
      $region18: #{visual_transformer_forward.16} parent=15 // pred_check_branch
        %80 = sbr.rel (%p78) target = $region20
      $region19: #{visual_transformer_forward.16} parent=15 // pred_region
        %p81 = scmp.lt.s32.totalorder %s7, 1
        %s82 = scalar_select %p81, %s7, 1
        %s83 = smul.addr %s82, 4
        %s84 = scalar_lea.vmem %s0, %s83
      $region20: #{visual_transformer_forward.16} parent=15 // pred_fallthru
        _
    $region16: #{visual_transformer_forward.16} parent=5 // pred_fallthru
      _
    %p85 = scmp.le.s32.totalorder 1, %s7
    %p86 = scmp.lt.s32.totalorder %s7, 3
    %p87 = pnand %p85, %p86
    %p88 = pneg %p87
    // Predicated region
    $region21: #{visual_transformer_forward.16} parent=5 // pred_check
      _
    $region22: #{visual_transformer_forward.16} parent=5 // pred_check_branch
      %90 = sbr.rel (%p87) target = $region24
    $region23: #{visual_transformer_forward.16} parent=5 // pred_region
      %s91 = ssub.s32 %s7, 1
      %p92 = scmp.lt.s32.totalorder %s12, 1
      %s93 = scalar_select %p92, %s12, 1
      %s94 = smul.addr %s93, 4
      %s95 = scalar_lea.vmem %s0, %s94
      %p96 = pneg %p33
      %p97 = pneg %p30
      %p98 = pneg %p59
      %p99 = pneg %p56
      %p100 = scmp.lt.s32.totalorder %s12, 1
      %s101 = scalar_select %p100, %s12, 1
      %s102 = smul.addr %s101, 4
      %s103 = scalar_lea.vmem %s1, %s102
      %p104 = scmp.lt.s32.totalorder %s12, 1
      %s105 = scalar_select %p104, %s12, 1
      %s106 = smul.addr %s105, 4
      %s107 = scalar_lea.vmem %s0, %s106
      %p108 = scmp.lt.s32.totalorder %s12, 1
      %s109 = scalar_select %p108, %s12, 1
      %s110 = smul.addr %s109, 4
      %s111 = scalar_lea.vmem %s1, %s110
      %v114 = vld [vmem:[%s107] sm:$0x7]
      %v115 = vmul.bf16 %v114, 1052065461
      %v117 = vunpack.c.l.b16 %v114
      %v118 = vpack.c.b16 %v117, %v117
      %119 = vrot.lane.b32.xlu0 %v118, 96
      %v120 = vpop.permute.xlu0 %119
      %vm121 = vcmask 64512
      %v123 = vsel %vm121, %v115, 0
      %v126 = vsel %vm121, %v120, 0
      %128 = vmatprep.subr.bf16.mxu0 0
      %129 = vmatpush1.bf16.xpose.msra.mxu0 %v126
      %130 = vmatprep.subr.bf16.mxu0 0
      %131 = vmatpush1.bf16.xpose.msra.mxu0 0
      %132 = vmatprep.subr.bf16.mxu0 0
      %133 = vmatpush1.bf16.xpose.msra.mxu0 0
      %134 = vmatprep.subr.bf16.mxu0 0
      %135 = vmatpush1.bf16.xpose.msra.mxu0 0
      %136 = vmatprep.subr.bf16.mxu0 0
      %137 = vmatpush1.bf16.xpose.msra.mxu0 0
      %138 = vmatprep.subr.bf16.mxu0 0
      %139 = vmatpush1.bf16.xpose.msra.mxu0 0
      %140 = vmatprep.subr.bf16.mxu0 0
      %141 = vmatpush1.bf16.xpose.msra.mxu0 0
      %142 = vmatprep.subr.bf16.mxu0 0
      %143 = vmatpush1.bf16.xpose.msra.mxu0 0
      %144 = vmatprep.subr.bf16.mxu0 0
      %145 = vmatpush1.bf16.xpose.msra.mxu0 0
      %146 = vmatprep.subr.bf16.mxu0 0
      %147 = vmatpush1.bf16.xpose.msra.mxu0 0
      %148 = vmatprep.subr.bf16.mxu0 0
      %149 = vmatpush1.bf16.xpose.msra.mxu0 0
      %150 = vmatprep.subr.bf16.mxu0 0
      %151 = vmatpush1.bf16.xpose.msra.mxu0 0
      %152 = vmatprep.subr.bf16.mxu0 0
      %153 = vmatpush1.bf16.xpose.msra.mxu0 0
      %154 = vmatprep.subr.bf16.mxu0 0
      %155 = vmatpush1.bf16.xpose.msra.mxu0 0
      %156 = vmatprep.subr.bf16.mxu0 0
      %157 = vmatpush1.bf16.xpose.msra.mxu0 0
      %158 = vmatprep.subr.bf16.mxu0 0
      %159 = vmatpush1.bf16.xpose.msra.mxu0 0
      %160 = vmatprep.mubr.bf16.mxu0 0
      %161 = vmatmul.mubr.bf16.gmra.mrb[0].mxu0 %v123
      %v162 = vpop.f32.mrb[0].mxu0
      %v163 = vadd.f32 0.0, %v162
      %v164 = vpop.f32.mrb[0].mxu0
      %v165 = vpop.f32.mrb[0].mxu0
      %v166 = vpop.f32.mrb[0].mxu0
      %167 = vdwg.mxu0
      %vm168 = vcmask 36864
      %v169 = vsel %vm168, %v163, -inf
      %170 = vmax.xlane.f32.xlu0 %v169
      %v171 = vpop.xlane.xlu0 %170
      %v172 = vsub.f32 %v163, %v171
      %v173 = vmul.f32 %v172, 1.442695
      %v174 = vpow.pop %v173
      %v175 = vsel %vm168, %v174, 0.0
      %176 = vadd.xlane.f32.xlu0 %v175
      %v177 = vpop.xlane.xlu0 %176
      %v178 = vpack.c.bf16 %v174, %v174
      %179 = vrot.lane.b32.xlu0 %v118, 64
      %v180 = vpop.permute.xlu0 %179
      %vm181 = vcmask 39936
      %v183 = vsel %vm181, %v178, 0
      %vm185 = vcmask 1041408
      %vm186 = vcmask 1042432
      %v187 = vsel %vm185, 4294967295, 65535
      %v188 = vsel %vm186, %v187, 0
      %v190 = vand.u32 %v180, %v188
      %192 = vmatprep.subr.bf16.mxu0 0
      %193 = vmatpush1.bf16.msra.mxu0 %v190
      %194 = vmatprep.subr.bf16.mxu0 0
      %195 = vmatpush1.bf16.msra.mxu0 0
      %196 = vmatprep.subr.bf16.mxu0 0
      %197 = vmatpush1.bf16.msra.mxu0 0
      %198 = vmatprep.subr.bf16.mxu0 0
      %199 = vmatpush1.bf16.msra.mxu0 0
      %200 = vmatprep.subr.bf16.mxu0 0
      %201 = vmatpush1.bf16.msra.mxu0 0
      %202 = vmatprep.subr.bf16.mxu0 0
      %203 = vmatpush1.bf16.msra.mxu0 0
      %204 = vmatprep.subr.bf16.mxu0 0
      %205 = vmatpush1.bf16.msra.mxu0 0
      %206 = vmatprep.subr.bf16.mxu0 0
      %207 = vmatpush1.bf16.msra.mxu0 0
      %208 = vmatprep.subr.bf16.mxu0 0
      %209 = vmatpush1.bf16.msra.mxu0 0
      %210 = vmatprep.subr.bf16.mxu0 0
      %211 = vmatpush1.bf16.msra.mxu0 0
      %212 = vmatprep.subr.bf16.mxu0 0
      %213 = vmatpush1.bf16.msra.mxu0 0
      %214 = vmatprep.subr.bf16.mxu0 0
      %215 = vmatpush1.bf16.msra.mxu0 0
      %216 = vmatprep.subr.bf16.mxu0 0
      %217 = vmatpush1.bf16.msra.mxu0 0
      %218 = vmatprep.subr.bf16.mxu0 0
      %219 = vmatpush1.bf16.msra.mxu0 0
      %220 = vmatprep.subr.bf16.mxu0 0
      %221 = vmatpush1.bf16.msra.mxu0 0
      %222 = vmatprep.subr.bf16.mxu0 0
      %223 = vmatpush1.bf16.msra.mxu0 0
      %224 = vmatprep.mubr.bf16.mxu0 0
      %225 = vmatmul.mubr.bf16.gmra.mrb[0].mxu0 %v183
      %v226 = vpop.f32.mrb[0].mxu0
      %v227 = vadd.f32 0.0, %v226
      %v228 = vpop.f32.mrb[0].mxu0
      %v229 = vpop.f32.mrb[0].mxu0
      %v230 = vpop.f32.mrb[0].mxu0
      %231 = vdwg.mxu0
      %v232 = vrcp.pop %v177
      %v233 = vmul.f32 %v227, %v232
      %v235 = vunpack.c.l.b16 %v115
      %v236 = vpack.c.b16 %v235, %v235
      %237 = vrot.lane.b32.xlu0 %v236, 120
      %v238 = vpop.permute.xlu0 %237
      %239 = vrot.lane.b32.xlu0 %v118, 88
      %v240 = vpop.permute.xlu0 %239
      %v242 = vsel %vm121, %v238, 0
      %v245 = vsel %vm121, %v240, 0
      %247 = vmatprep.subr.bf16.mxu0 0
      %248 = vmatpush1.bf16.xpose.msra.mxu0 %v245
      %249 = vmatprep.subr.bf16.mxu0 0
      %250 = vmatpush1.bf16.xpose.msra.mxu0 0
      %251 = vmatprep.subr.bf16.mxu0 0
      %252 = vmatpush1.bf16.xpose.msra.mxu0 0
      %253 = vmatprep.subr.bf16.mxu0 0
      %254 = vmatpush1.bf16.xpose.msra.mxu0 0
      %255 = vmatprep.subr.bf16.mxu0 0
      %256 = vmatpush1.bf16.xpose.msra.mxu0 0
      %257 = vmatprep.subr.bf16.mxu0 0
      %258 = vmatpush1.bf16.xpose.msra.mxu0 0
      %259 = vmatprep.subr.bf16.mxu0 0
      %260 = vmatpush1.bf16.xpose.msra.mxu0 0
      %261 = vmatprep.subr.bf16.mxu0 0
      %262 = vmatpush1.bf16.xpose.msra.mxu0 0
      %263 = vmatprep.subr.bf16.mxu0 0
      %264 = vmatpush1.bf16.xpose.msra.mxu0 0
      %265 = vmatprep.subr.bf16.mxu0 0
      %266 = vmatpush1.bf16.xpose.msra.mxu0 0
      %267 = vmatprep.subr.bf16.mxu0 0
      %268 = vmatpush1.bf16.xpose.msra.mxu0 0
      %269 = vmatprep.subr.bf16.mxu0 0
      %270 = vmatpush1.bf16.xpose.msra.mxu0 0
      %271 = vmatprep.subr.bf16.mxu0 0
      %272 = vmatpush1.bf16.xpose.msra.mxu0 0
      %273 = vmatprep.subr.bf16.mxu0 0
      %274 = vmatpush1.bf16.xpose.msra.mxu0 0
      %275 = vmatprep.subr.bf16.mxu0 0
      %276 = vmatpush1.bf16.xpose.msra.mxu0 0
      %277 = vmatprep.subr.bf16.mxu0 0
      %278 = vmatpush1.bf16.xpose.msra.mxu0 0
      %279 = vmatprep.mubr.bf16.mxu0 0
      %280 = vmatmul.mubr.bf16.gmra.mrb[0].mxu0 %v242
      %v281 = vpop.f32.mrb[0].mxu0
      %v282 = vadd.f32 0.0, %v281
      %v283 = vpop.f32.mrb[0].mxu0
      %v284 = vpop.f32.mrb[0].mxu0
      %v285 = vpop.f32.mrb[0].mxu0
      %286 = vdwg.mxu0
      %v287 = vsel %vm168, %v282, -inf
      %288 = vmax.xlane.f32.xlu0 %v287
      %v289 = vpop.xlane.xlu0 %288
      %v290 = vsub.f32 %v282, %v289
      %v291 = vmul.f32 %v290, 1.442695
      %v292 = vpow.pop %v291
      %v293 = vsel %vm168, %v292, 0.0
      %294 = vadd.xlane.f32.xlu0 %v293
      %v295 = vpop.xlane.xlu0 %294
      %v296 = vpack.c.bf16 %v292, %v292
      %297 = vrot.lane.b32.xlu0 %v118, 56
      %v298 = vpop.permute.xlu0 %297
      %v300 = vsel %vm181, %v296, 0
      %v303 = vand.u32 %v298, %v188
      %305 = vmatprep.subr.bf16.mxu0 0
      %306 = vmatpush1.bf16.msra.mxu0 %v303
      %307 = vmatprep.subr.bf16.mxu0 0
      %308 = vmatpush1.bf16.msra.mxu0 0
      %309 = vmatprep.subr.bf16.mxu0 0
      %310 = vmatpush1.bf16.msra.mxu0 0
      %311 = vmatprep.subr.bf16.mxu0 0
      %312 = vmatpush1.bf16.msra.mxu0 0
      %313 = vmatprep.subr.bf16.mxu0 0
      %314 = vmatpush1.bf16.msra.mxu0 0
      %315 = vmatprep.subr.bf16.mxu0 0
      %316 = vmatpush1.bf16.msra.mxu0 0
      %317 = vmatprep.subr.bf16.mxu0 0
      %318 = vmatpush1.bf16.msra.mxu0 0
      %319 = vmatprep.subr.bf16.mxu0 0
      %320 = vmatpush1.bf16.msra.mxu0 0
      %321 = vmatprep.subr.bf16.mxu0 0
      %322 = vmatpush1.bf16.msra.mxu0 0
      %323 = vmatprep.subr.bf16.mxu0 0
      %324 = vmatpush1.bf16.msra.mxu0 0
      %325 = vmatprep.subr.bf16.mxu0 0
      %326 = vmatpush1.bf16.msra.mxu0 0
      %327 = vmatprep.subr.bf16.mxu0 0
      %328 = vmatpush1.bf16.msra.mxu0 0
      %329 = vmatprep.subr.bf16.mxu0 0
      %330 = vmatpush1.bf16.msra.mxu0 0
      %331 = vmatprep.subr.bf16.mxu0 0
      %332 = vmatpush1.bf16.msra.mxu0 0
      %333 = vmatprep.subr.bf16.mxu0 0
      %334 = vmatpush1.bf16.msra.mxu0 0
      %335 = vmatprep.subr.bf16.mxu0 0
      %336 = vmatpush1.bf16.msra.mxu0 0
      %337 = vmatprep.mubr.bf16.mxu0 0
      %338 = vmatmul.mubr.bf16.gmra.mrb[0].mxu0 %v300
      %v339 = vpop.f32.mrb[0].mxu0
      %v340 = vadd.f32 0.0, %v339
      %v341 = vpop.f32.mrb[0].mxu0
      %v342 = vpop.f32.mrb[0].mxu0
      %v343 = vpop.f32.mrb[0].mxu0
      %344 = vdwg.mxu0
      %v345 = vrcp.pop %v295
      %v346 = vmul.f32 %v340, %v345
      %347 = vrot.lane.b32.xlu0 %v236, 112
      %v348 = vpop.permute.xlu0 %347
      %349 = vrot.lane.b32.xlu0 %v118, 80
      %v350 = vpop.permute.xlu0 %349
      %v352 = vsel %vm121, %v348, 0
      %v355 = vsel %vm121, %v350, 0
      %357 = vmatprep.subr.bf16.mxu0 0
      %358 = vmatpush1.bf16.xpose.msra.mxu0 %v355
      %359 = vmatprep.subr.bf16.mxu0 0
      %360 = vmatpush1.bf16.xpose.msra.mxu0 0
      %361 = vmatprep.subr.bf16.mxu0 0
      %362 = vmatpush1.bf16.xpose.msra.mxu0 0
      %363 = vmatprep.subr.bf16.mxu0 0
      %364 = vmatpush1.bf16.xpose.msra.mxu0 0
      %365 = vmatprep.subr.bf16.mxu0 0
      %366 = vmatpush1.bf16.xpose.msra.mxu0 0
      %367 = vmatprep.subr.bf16.mxu0 0
      %368 = vmatpush1.bf16.xpose.msra.mxu0 0
      %369 = vmatprep.subr.bf16.mxu0 0
      %370 = vmatpush1.bf16.xpose.msra.mxu0 0
      %371 = vmatprep.subr.bf16.mxu0 0
      %372 = vmatpush1.bf16.xpose.msra.mxu0 0
      %373 = vmatprep.subr.bf16.mxu0 0
      %374 = vmatpush1.bf16.xpose.msra.mxu0 0
      %375 = vmatprep.subr.bf16.mxu0 0
      %376 = vmatpush1.bf16.xpose.msra.mxu0 0
      %377 = vmatprep.subr.bf16.mxu0 0
      %378 = vmatpush1.bf16.xpose.msra.mxu0 0
      %379 = vmatprep.subr.bf16.mxu0 0
      %380 = vmatpush1.bf16.xpose.msra.mxu0 0
      %381 = vmatprep.subr.bf16.mxu0 0
      %382 = vmatpush1.bf16.xpose.msra.mxu0 0
      %383 = vmatprep.subr.bf16.mxu0 0
      %384 = vmatpush1.bf16.xpose.msra.mxu0 0
      %385 = vmatprep.subr.bf16.mxu0 0
      %386 = vmatpush1.bf16.xpose.msra.mxu0 0
      %387 = vmatprep.subr.bf16.mxu0 0
      %388 = vmatpush1.bf16.xpose.msra.mxu0 0
      %389 = vmatprep.mubr.bf16.mxu0 0
      %390 = vmatmul.mubr.bf16.gmra.mrb[0].mxu0 %v352
      %v391 = vpop.f32.mrb[0].mxu0
      %v392 = vadd.f32 0.0, %v391
      %v393 = vpop.f32.mrb[0].mxu0
      %v394 = vpop.f32.mrb[0].mxu0
      %v395 = vpop.f32.mrb[0].mxu0
      %396 = vdwg.mxu0
      %v397 = vsel %vm168, %v392, -inf
      %398 = vmax.xlane.f32.xlu0 %v397
      %v399 = vpop.xlane.xlu0 %398
      %v400 = vsub.f32 %v392, %v399
      %v401 = vmul.f32 %v400, 1.442695
      %v402 = vpow.pop %v401
      %v403 = vsel %vm168, %v402, 0.0
      %404 = vadd.xlane.f32.xlu0 %v403
      %v405 = vpop.xlane.xlu0 %404
      %v406 = vpack.c.bf16 %v402, %v402
      %407 = vrot.lane.b32.xlu0 %v118, 48
      %v408 = vpop.permute.xlu0 %407
      %v410 = vsel %vm181, %v406, 0
      %v413 = vand.u32 %v408, %v188
      %415 = vmatprep.subr.bf16.mxu0 0
      %416 = vmatpush1.bf16.msra.mxu0 %v413
      %417 = vmatprep.subr.bf16.mxu0 0
      %418 = vmatpush1.bf16.msra.mxu0 0
      %419 = vmatprep.subr.bf16.mxu0 0
      %420 = vmatpush1.bf16.msra.mxu0 0
      %421 = vmatprep.subr.bf16.mxu0 0
      %422 = vmatpush1.bf16.msra.mxu0 0
      %423 = vmatprep.subr.bf16.mxu0 0
      %424 = vmatpush1.bf16.msra.mxu0 0
      %425 = vmatprep.subr.bf16.mxu0 0
      %426 = vmatpush1.bf16.msra.mxu0 0
      %427 = vmatprep.subr.bf16.mxu0 0
      %428 = vmatpush1.bf16.msra.mxu0 0
      %429 = vmatprep.subr.bf16.mxu0 0
      %430 = vmatpush1.bf16.msra.mxu0 0
      %431 = vmatprep.subr.bf16.mxu0 0
      %432 = vmatpush1.bf16.msra.mxu0 0
      %433 = vmatprep.subr.bf16.mxu0 0
      %434 = vmatpush1.bf16.msra.mxu0 0
      %435 = vmatprep.subr.bf16.mxu0 0
      %436 = vmatpush1.bf16.msra.mxu0 0
      %437 = vmatprep.subr.bf16.mxu0 0
      %438 = vmatpush1.bf16.msra.mxu0 0
      %439 = vmatprep.subr.bf16.mxu0 0
      %440 = vmatpush1.bf16.msra.mxu0 0
      %441 = vmatprep.subr.bf16.mxu0 0
      %442 = vmatpush1.bf16.msra.mxu0 0
      %443 = vmatprep.subr.bf16.mxu0 0
      %444 = vmatpush1.bf16.msra.mxu0 0
      %445 = vmatprep.subr.bf16.mxu0 0
      %446 = vmatpush1.bf16.msra.mxu0 0
      %447 = vmatprep.mubr.bf16.mxu0 0
      %448 = vmatmul.mubr.bf16.gmra.mrb[0].mxu0 %v410
      %v449 = vpop.f32.mrb[0].mxu0
      %v450 = vadd.f32 0.0, %v449
      %v451 = vpop.f32.mrb[0].mxu0
      %v452 = vpop.f32.mrb[0].mxu0
      %v453 = vpop.f32.mrb[0].mxu0
      %454 = vdwg.mxu0
      %v455 = vrcp.pop %v405
      %v456 = vmul.f32 %v450, %v455
      %457 = vrot.lane.b32.xlu0 %v236, 104
      %v458 = vpop.permute.xlu0 %457
      %459 = vrot.lane.b32.xlu0 %v118, 72
      %v460 = vpop.permute.xlu0 %459
      %v462 = vsel %vm121, %v458, 0
      %v465 = vsel %vm121, %v460, 0
      %467 = vmatprep.subr.bf16.mxu0 0
      %468 = vmatpush1.bf16.xpose.msra.mxu0 %v465
      %469 = vmatprep.subr.bf16.mxu0 0
      %470 = vmatpush1.bf16.xpose.msra.mxu0 0
      %471 = vmatprep.subr.bf16.mxu0 0
      %472 = vmatpush1.bf16.xpose.msra.mxu0 0
      %473 = vmatprep.subr.bf16.mxu0 0
      %474 = vmatpush1.bf16.xpose.msra.mxu0 0
      %475 = vmatprep.subr.bf16.mxu0 0
      %476 = vmatpush1.bf16.xpose.msra.mxu0 0
      %477 = vmatprep.subr.bf16.mxu0 0
      %478 = vmatpush1.bf16.xpose.msra.mxu0 0
      %479 = vmatprep.subr.bf16.mxu0 0
      %480 = vmatpush1.bf16.xpose.msra.mxu0 0
      %481 = vmatprep.subr.bf16.mxu0 0
      %482 = vmatpush1.bf16.xpose.msra.mxu0 0
      %483 = vmatprep.subr.bf16.mxu0 0
      %484 = vmatpush1.bf16.xpose.msra.mxu0 0
      %485 = vmatprep.subr.bf16.mxu0 0
      %486 = vmatpush1.bf16.xpose.msra.mxu0 0
      %487 = vmatprep.subr.bf16.mxu0 0
      %488 = vmatpush1.bf16.xpose.msra.mxu0 0
      %489 = vmatprep.subr.bf16.mxu0 0
      %490 = vmatpush1.bf16.xpose.msra.mxu0 0
      %491 = vmatprep.subr.bf16.mxu0 0
      %492 = vmatpush1.bf16.xpose.msra.mxu0 0
      %493 = vmatprep.subr.bf16.mxu0 0
      %494 = vmatpush1.bf16.xpose.msra.mxu0 0
      %495 = vmatprep.subr.bf16.mxu0 0
      %496 = vmatpush1.bf16.xpose.msra.mxu0 0
      %497 = vmatprep.subr.bf16.mxu0 0
      %498 = vmatpush1.bf16.xpose.msra.mxu0 0
      %499 = vmatprep.mubr.bf16.mxu0 0
      %500 = vmatmul.mubr.bf16.gmra.mrb[0].mxu0 %v462
      %v501 = vpop.f32.mrb[0].mxu0
      %v502 = vadd.f32 0.0, %v501
      %v503 = vpop.f32.mrb[0].mxu0
      %v504 = vpop.f32.mrb[0].mxu0
      %v505 = vpop.f32.mrb[0].mxu0
      %506 = vdwg.mxu0
      %v507 = vsel %vm168, %v502, -inf
      %508 = vmax.xlane.f32.xlu0 %v507
      %v509 = vpop.xlane.xlu0 %508
      %v510 = vsub.f32 %v502, %v509
      %v511 = vmul.f32 %v510, 1.442695
      %v512 = vpow.pop %v511
      %v513 = vsel %vm168, %v512, 0.0
      %514 = vadd.xlane.f32.xlu0 %v513
      %v515 = vpop.xlane.xlu0 %514
      %v516 = vpack.c.bf16 %v512, %v512
      %517 = vrot.lane.b32.xlu0 %v118, 40
      %v518 = vpop.permute.xlu0 %517
      %v520 = vsel %vm181, %v516, 0
      %v523 = vand.u32 %v518, %v188
      %525 = vmatprep.subr.bf16.mxu0 0
      %526 = vmatpush1.bf16.msra.mxu0 %v523
      %527 = vmatprep.subr.bf16.mxu0 0
      %528 = vmatpush1.bf16.msra.mxu0 0
      %529 = vmatprep.subr.bf16.mxu0 0
      %530 = vmatpush1.bf16.msra.mxu0 0
      %531 = vmatprep.subr.bf16.mxu0 0
      %532 = vmatpush1.bf16.msra.mxu0 0
      %533 = vmatprep.subr.bf16.mxu0 0
      %534 = vmatpush1.bf16.msra.mxu0 0
      %535 = vmatprep.subr.bf16.mxu0 0
      %536 = vmatpush1.bf16.msra.mxu0 0
      %537 = vmatprep.subr.bf16.mxu0 0
      %538 = vmatpush1.bf16.msra.mxu0 0
      %539 = vmatprep.subr.bf16.mxu0 0
      %540 = vmatpush1.bf16.msra.mxu0 0
      %541 = vmatprep.subr.bf16.mxu0 0
      %542 = vmatpush1.bf16.msra.mxu0 0
      %543 = vmatprep.subr.bf16.mxu0 0
      %544 = vmatpush1.bf16.msra.mxu0 0
      %545 = vmatprep.subr.bf16.mxu0 0
      %546 = vmatpush1.bf16.msra.mxu0 0
      %547 = vmatprep.subr.bf16.mxu0 0
      %548 = vmatpush1.bf16.msra.mxu0 0
      %549 = vmatprep.subr.bf16.mxu0 0
      %550 = vmatpush1.bf16.msra.mxu0 0
      %551 = vmatprep.subr.bf16.mxu0 0
      %552 = vmatpush1.bf16.msra.mxu0 0
      %553 = vmatprep.subr.bf16.mxu0 0
      %554 = vmatpush1.bf16.msra.mxu0 0
      %555 = vmatprep.subr.bf16.mxu0 0
      %556 = vmatpush1.bf16.msra.mxu0 0
      %557 = vmatprep.mubr.bf16.mxu0 0
      %558 = vmatmul.mubr.bf16.gmra.mrb[0].mxu0 %v520
      %v559 = vpop.f32.mrb[0].mxu0
      %v560 = vadd.f32 0.0, %v559
      %v561 = vpop.f32.mrb[0].mxu0
      %v562 = vpop.f32.mrb[0].mxu0
      %v563 = vpop.f32.mrb[0].mxu0
      %564 = vdwg.mxu0
      %v565 = vrcp.pop %v515
      %v566 = vmul.f32 %v560, %v565
      %568 = vrot.lane.b32.xlu0 %v346, 8
      %v569 = vpop.permute.xlu0 %568
      %572 = vrot.lane.b32.xlu0 %v456, 16
      %v573 = vpop.permute.xlu0 %572
      %576 = vrot.lane.b32.xlu0 %v566, 24
      %v577 = vpop.permute.xlu0 %576
      %v579 = vsel %vm121, %v233, %v569
      %vm580 = vcmask 130048
      %v581 = vsel %vm580, %v579, %v573
      %vm582 = vcmask 195584
      %v583 = vsel %vm582, %v581, %v577
      %v584 = vpack.c.bf16 %v583, %v583
      %vm585 = vcmask 256000
      %vm586 = vsmask.f32 2304
      %vm587 = vmand %vm585, %vm586
      %v588 = vld [vmem:[%s111] sm:$0x7]
      %v589 = vsel %vm587, %v584, %v588
      %590 = vst [vmem:[%s111] sm:$0x7] %v589
      %p591 = scmp.lt.s32.totalorder %s12, 1
      %s592 = scalar_select %p591, %s12, 1
      %s593 = smul.addr %s592, 4
      %s594 = scalar_lea.vmem %s1, %s593
      // Predicated region
      $region25: #{visual_transformer_forward.16} parent=23 // pred_check
        %p595 = pneg %p56
      $region26: #{visual_transformer_forward.16} parent=23 // pred_check_branch
        %597 = sbr.rel (%p595) target = $region28
      $region27: #{visual_transformer_forward.16} parent=23 // pred_region
        _
      $region28: #{visual_transformer_forward.16} parent=23 // pred_fallthru
        _
    $region24: #{visual_transformer_forward.16} parent=5 // pred_fallthru
      _
    %p598 = scmp.le.s32.totalorder 2, %s7
    // Predicated region
    $region29: #{visual_transformer_forward.16} parent=5 // pred_check
      %p599 = pneg %p598
    $region30: #{visual_transformer_forward.16} parent=5 // pred_check_branch
      %601 = sbr.rel (%p599) target = $region32
    $region31: #{visual_transformer_forward.16} parent=5 // pred_region
      %s602 = ssub.s32 %s7, 2
      // Predicated region
      $region33: #{visual_transformer_forward.16} parent=31 // pred_check
        %p603 = pneg %p62
      $region34: #{visual_transformer_forward.16} parent=31 // pred_check_branch
        %605 = sbr.rel (%p603) target = $region36
      $region35: #{visual_transformer_forward.16} parent=31 // pred_region
        %p606 = scmp.lt.s32.totalorder %s13, 1
        %s607 = scalar_select %p606, %s13, 1
        %s608 = smul.addr %s607, 4
        %s609 = scalar_lea.vmem %s1, %s608
      $region36: #{visual_transformer_forward.16} parent=31 // pred_fallthru
        _
    $region32: #{visual_transformer_forward.16} parent=5 // pred_fallthru
      _
  $region6: #{visual_transformer_forward.16} parent=0 // loop_footer
    %s11 = sadd.s32 1, %s7
  $region7: #{visual_transformer_forward.16} parent=0 // loop_footer_branch
    %6 = sbr.rel target = $region3
  $region8: #{visual_transformer_forward.16} parent=0 // loop_exit
    _

// kernel: visual_transformer_forward.17
$region0: #{visual_transformer_forward.17}
  #allocation0 [shape = 'u32[]', space=smem, size = 0x4, offset = 0x4, fixed_abs, tag = 'smem constant byte address 0x4 - core index']
  #allocation1 [shape = 'u32[144,128]{1,0:T(1,128)}', space=vmem, size = 0x12000, scoped, tag = 'internal scratch']
  #allocation2 [shape = 'f32[16,128]{1,0:T(8,128)}', space=vmem, size = 0x2000, scoped, tag = 'scratch operand']
  %s0 = inlined_call_operand.vmem [shape: bf16[16,128], index: 0, kind: input, shape index: {}]
  %s1 = inlined_call_operand.vmem [shape: bf16[128,128], index: 1, kind: input, shape index: {}]
  %s2 = inlined_call_operand.vmem [shape: f32[1,128], index: 2, kind: input, shape index: {}]
  %s3 = inlined_call_operand.vmem [shape: bf16[16,128], index: 3, kind: input, shape index: {}]
  %s4 = inlined_call_operand.vmem [shape: bf16[16,128], index: 4, kind: output, shape index: {}]
  %s5 = sld [smem:[#allocation0]]
  $region34: #{visual_transformer_forward.17} parent=0
    _
  %s7 = ssub.s32 1, %s5
  %s8 = scalar_select 0, %s7, %s5
  // Predicated region
  $region2: #{visual_transformer_forward.17} parent=0 // pred_check
    _
  $region3: #{visual_transformer_forward.17} parent=0 // pred_check_branch
    %10 = sbr.rel (0) target = $region5
  $region4: #{visual_transformer_forward.17} parent=0 // pred_region
    _
  $region5: #{visual_transformer_forward.17} parent=0 // pred_fallthru
    _
  // Predicated region
  $region6: #{visual_transformer_forward.17} parent=0 // pred_check
    _
  $region7: #{visual_transformer_forward.17} parent=0 // pred_check_branch
    %12 = sbr.rel (0) target = $region9
  $region8: #{visual_transformer_forward.17} parent=0 // pred_region
    _
  $region9: #{visual_transformer_forward.17} parent=0 // pred_fallthru
    _
  // Predicated region
  $region10: #{visual_transformer_forward.17} parent=0 // pred_check
    _
  $region11: #{visual_transformer_forward.17} parent=0 // pred_check_branch
    %14 = sbr.rel (0) target = $region13
  $region12: #{visual_transformer_forward.17} parent=0 // pred_region
    _
  $region13: #{visual_transformer_forward.17} parent=0 // pred_fallthru
    _
  // Predicated region
  $region14: #{visual_transformer_forward.17} parent=0 // pred_check
    _
  $region15: #{visual_transformer_forward.17} parent=0 // pred_check_branch
    %16 = sbr.rel (0) target = $region17
  $region16: #{visual_transformer_forward.17} parent=0 // pred_region
    _
  $region17: #{visual_transformer_forward.17} parent=0 // pred_fallthru
    _
  %p18 = scmp.eq.s32.totalorder 0, 0
  // Predicated region
  $region18: #{visual_transformer_forward.17} parent=0 // pred_check
    %p19 = pneg %p18
  $region19: #{visual_transformer_forward.17} parent=0 // pred_check_branch
    %21 = sbr.rel (%p19) target = $region21
  $region20: #{visual_transformer_forward.17} parent=0 // pred_region
    %22 = vst [vmem:[#allocation2] sm:$0xff] 0.0
    %23 = vst [vmem:[#allocation2 + $0x8] sm:$0xff] 0.0
  $region21: #{visual_transformer_forward.17} parent=0 // pred_fallthru
    _
  %v24 = vld [vmem:[#allocation2] sm:$0xff]
  %v25 = vld [vmem:[#allocation2 + $0x8] sm:$0xff]
  %v26 = vld [vmem:[%s0] sm:$0xf]
  %v27 = vld [vmem:[%s0 + $0x4] sm:$0xf]
  %v28 = vld [vmem:[%s1] sm:$0xf]
  %v29 = vld [vmem:[%s1 + $0x4] sm:$0xf]
  %v30 = vld [vmem:[%s1 + $0x8] sm:$0xf]
  %v31 = vld [vmem:[%s1 + $0xc] sm:$0xf]
  %v32 = vld [vmem:[%s1 + $0x10] sm:$0xf]
  %v33 = vld [vmem:[%s1 + $0x14] sm:$0xf]
  %v34 = vld [vmem:[%s1 + $0x18] sm:$0xf]
  %v35 = vld [vmem:[%s1 + $0x1c] sm:$0xf]
  %v36 = vld [vmem:[%s1 + $0x20] sm:$0xf]
  %v37 = vld [vmem:[%s1 + $0x24] sm:$0xf]
  %v38 = vld [vmem:[%s1 + $0x28] sm:$0xf]
  %v39 = vld [vmem:[%s1 + $0x2c] sm:$0xf]
  %v40 = vld [vmem:[%s1 + $0x30] sm:$0xf]
  %v41 = vld [vmem:[%s1 + $0x34] sm:$0xf]
  %v42 = vld [vmem:[%s1 + $0x38] sm:$0xf]
  %v43 = vld [vmem:[%s1 + $0x3c] sm:$0xf]
  %v46 = vunpack.c.l.b16 %v26
  %v47 = vunpack.c.l.b16 %v27
  %v48 = vpack.c.b16 %v47, %v46
  %v66 = vunpack.c.l.b16 %v28
  %v67 = vunpack.c.l.b16 %v29
  %v68 = vunpack.c.l.b16 %v30
  %v69 = vunpack.c.l.b16 %v31
  %v70 = vunpack.c.l.b16 %v32
  %v71 = vunpack.c.l.b16 %v33
  %v72 = vunpack.c.l.b16 %v34
  %v73 = vunpack.c.l.b16 %v35
  %v74 = vunpack.c.l.b16 %v36
  %v75 = vunpack.c.l.b16 %v37
  %v76 = vunpack.c.l.b16 %v38
  %v77 = vunpack.c.l.b16 %v39
  %v78 = vunpack.c.l.b16 %v40
  %v79 = vunpack.c.l.b16 %v41
  %v80 = vunpack.c.l.b16 %v42
  %v81 = vunpack.c.l.b16 %v43
  %v82 = vpack.c.b16 %v67, %v66
  %v83 = vpack.c.b16 %v69, %v68
  %v84 = vpack.c.b16 %v71, %v70
  %v85 = vpack.c.b16 %v73, %v72
  %v86 = vpack.c.b16 %v75, %v74
  %v87 = vpack.c.b16 %v77, %v76
  %v88 = vpack.c.b16 %v79, %v78
  %v89 = vpack.c.b16 %v81, %v80
  %98 = vmatprep.subr.bf16.mxu0 0
  %99 = vmatpush1.bf16.msra.mxu0 %v82
  %100 = vmatprep.subr.bf16.mxu0 0
  %101 = vmatpush1.bf16.msra.mxu0 %v83
  %102 = vmatprep.subr.bf16.mxu0 0
  %103 = vmatpush1.bf16.msra.mxu0 %v84
  %104 = vmatprep.subr.bf16.mxu0 0
  %105 = vmatpush1.bf16.msra.mxu0 %v85
  %106 = vmatprep.subr.bf16.mxu0 0
  %107 = vmatpush1.bf16.msra.mxu0 %v86
  %108 = vmatprep.subr.bf16.mxu0 0
  %109 = vmatpush1.bf16.msra.mxu0 %v87
  %110 = vmatprep.subr.bf16.mxu0 0
  %111 = vmatpush1.bf16.msra.mxu0 %v88
  %112 = vmatprep.subr.bf16.mxu0 0
  %113 = vmatpush1.bf16.msra.mxu0 %v89
  %114 = vmatprep.subr.bf16.mxu0 0
  %115 = vmatpush1.bf16.msra.mxu0 0
  %116 = vmatprep.subr.bf16.mxu0 0
  %117 = vmatpush1.bf16.msra.mxu0 0
  %118 = vmatprep.subr.bf16.mxu0 0
  %119 = vmatpush1.bf16.msra.mxu0 0
  %120 = vmatprep.subr.bf16.mxu0 0
  %121 = vmatpush1.bf16.msra.mxu0 0
  %122 = vmatprep.subr.bf16.mxu0 0
  %123 = vmatpush1.bf16.msra.mxu0 0
  %124 = vmatprep.subr.bf16.mxu0 0
  %125 = vmatpush1.bf16.msra.mxu0 0
  %126 = vmatprep.subr.bf16.mxu0 0
  %127 = vmatpush1.bf16.msra.mxu0 0
  %128 = vmatprep.subr.bf16.mxu0 0
  %129 = vmatpush1.bf16.msra.mxu0 0
  %130 = vmatprep.mubr.bf16.mxu0 0
  %131 = vmatmul.mubr.bf16.gmra.mrb[0].mxu0 %v48
  %v132 = vpop.f32.mrb[0].mxu0
  %v133 = vadd.f32 0.0, %v132
  %v134 = vpop.f32.mrb[0].mxu0
  %v135 = vpop.f32.mrb[0].mxu0
  %v136 = vadd.f32 0.0, %v135
  %v137 = vpop.f32.mrb[0].mxu0
  %138 = vdwg.mxu0
  %v139 = vadd.f32 %v24, %v133
  %v140 = vadd.f32 %v25, %v136
  %141 = vst [vmem:[#allocation2] sm:$0xff] %v139
  %142 = vst [vmem:[#allocation2 + $0x8] sm:$0xff] %v140
  // Predicated region
  $region22: #{visual_transformer_forward.17} parent=0 // pred_check
    %p143 = pneg %p18
  $region23: #{visual_transformer_forward.17} parent=0 // pred_check_branch
    %145 = sbr.rel (%p143) target = $region25
  $region24: #{visual_transformer_forward.17} parent=0 // pred_region
    %v146 = vld [vmem:[#allocation2] sm:$0xff]
    %v147 = vld [vmem:[#allocation2 + $0x8] sm:$0xff]
    %v148 = vld [vmem:[%s2] sm:$0x1]
    %v150 = vlaneseq
    %v151 = vshrl.u32 %v150, 7
    %v152 = vsub.s32 0, %v151
    %v153 = vrot.slane %v148, %v152
    %v155 = vadd.f32 %v146, %v153
    %v156 = vadd.f32 %v147, %v153
    %v157 = vld [vmem:[%s3] sm:$0xf]
    %v158 = vld [vmem:[%s3 + $0x4] sm:$0xf]
    %v159 = vunpack.c.l.bf16 %v157
    %v160 = vunpack.c.l.bf16 %v158
    %v161 = vadd.f32 %v155, %v159
    %v162 = vadd.f32 %v156, %v160
    %v163 = vpack.c.bf16 %v162, %v161
    %v165 = vunpack.c.l.b16 %v163
    %v166 = vunpack.c.h.b16 %v163
    %v167 = vpack.c.b16 %v165, %v165
    %v168 = vpack.c.b16 %v166, %v166
    %171 = vst [vmem:[%s4] sm:$0xf] %v167
    %172 = vst [vmem:[%s4 + $0x4] sm:$0xf] %v168
  $region25: #{visual_transformer_forward.17} parent=0 // pred_fallthru
    _
  // Predicated region
  $region26: #{visual_transformer_forward.17} parent=0 // pred_check
    _
  $region27: #{visual_transformer_forward.17} parent=0 // pred_check_branch
    %174 = sbr.rel (0) target = $region29
  $region28: #{visual_transformer_forward.17} parent=0 // pred_region
    _
  $region29: #{visual_transformer_forward.17} parent=0 // pred_fallthru
    _
  // Predicated region
  $region30: #{visual_transformer_forward.17} parent=0 // pred_check
    _
  $region31: #{visual_transformer_forward.17} parent=0 // pred_check_branch
    %176 = sbr.rel (0) target = $region33
  $region32: #{visual_transformer_forward.17} parent=0 // pred_region
    _
  $region33: #{visual_transformer_forward.17} parent=0 // pred_fallthru
    _

// kernel: visual_transformer_forward.18
$region0: #{visual_transformer_forward.18}
  #allocation0 [shape = 'u32[]', space=smem, size = 0x4, offset = 0x4, fixed_abs, tag = 'smem constant byte address 0x4 - core index']
  #allocation1 [shape = 'u32[144,128]{1,0:T(1,128)}', space=vmem, size = 0x12000, scoped, tag = 'internal scratch']
  %s0 = inlined_call_operand.vmem [shape: bf16[16,32], index: 0, kind: input, shape index: {}]
  %s1 = inlined_call_operand.vmem [shape: f32[1,32], index: 1, kind: input, shape index: {}]
  %s2 = inlined_call_operand.vmem [shape: f32[1,32], index: 2, kind: input, shape index: {}]
  %s3 = inlined_call_operand.vmem [shape: bf16[32,128], index: 3, kind: input, shape index: {}]
  %s4 = inlined_call_operand.vmem [shape: f32[1,128], index: 4, kind: input, shape index: {}]
  %s5 = inlined_call_operand.vmem [shape: bf16[16,128], index: 5, kind: output, shape index: {}]
  %s6 = sld [smem:[#allocation0]]
  $region30: #{visual_transformer_forward.18} parent=0
    _
  %s8 = ssub.s32 1, %s6
  %s9 = scalar_select 0, %s8, %s6
  // Predicated region
  $region2: #{visual_transformer_forward.18} parent=0 // pred_check
    _
  $region3: #{visual_transformer_forward.18} parent=0 // pred_check_branch
    %11 = sbr.rel (0) target = $region5
  $region4: #{visual_transformer_forward.18} parent=0 // pred_region
    _
  $region5: #{visual_transformer_forward.18} parent=0 // pred_fallthru
    _
  // Predicated region
  $region6: #{visual_transformer_forward.18} parent=0 // pred_check
    _
  $region7: #{visual_transformer_forward.18} parent=0 // pred_check_branch
    %13 = sbr.rel (0) target = $region9
  $region8: #{visual_transformer_forward.18} parent=0 // pred_region
    _
  $region9: #{visual_transformer_forward.18} parent=0 // pred_fallthru
    _
  // Predicated region
  $region10: #{visual_transformer_forward.18} parent=0 // pred_check
    _
  $region11: #{visual_transformer_forward.18} parent=0 // pred_check_branch
    %15 = sbr.rel (0) target = $region13
  $region12: #{visual_transformer_forward.18} parent=0 // pred_region
    _
  $region13: #{visual_transformer_forward.18} parent=0 // pred_fallthru
    _
  // Predicated region
  $region14: #{visual_transformer_forward.18} parent=0 // pred_check
    _
  $region15: #{visual_transformer_forward.18} parent=0 // pred_check_branch
    %17 = sbr.rel (0) target = $region17
  $region16: #{visual_transformer_forward.18} parent=0 // pred_region
    _
  $region17: #{visual_transformer_forward.18} parent=0 // pred_fallthru
    _
  // Predicated region
  $region18: #{visual_transformer_forward.18} parent=0 // pred_check
    _
  $region19: #{visual_transformer_forward.18} parent=0 // pred_check_branch
    %19 = sbr.rel (0) target = $region21
  $region20: #{visual_transformer_forward.18} parent=0 // pred_region
    _
  $region21: #{visual_transformer_forward.18} parent=0 // pred_fallthru
    _
  %v21 = vld [vmem:[%s0] sm:$0xf]
  %v22 = vld [vmem:[%s0 + $0x4] sm:$0xf]
  %v23 = vunpack.c.l.bf16 %v21
  %v24 = vunpack.c.l.bf16 %v22
  %vm25 = vcmask 261120
  %v26 = vsel %vm25, %v23, 0.0
  %27 = vadd.xlane.f32.xlu0 %v26
  %v28 = vpop.xlane.xlu0 %27
  %v29 = vsel %vm25, %v24, 0.0
  %30 = vadd.xlane.f32.xlu0 %v29
  %v31 = vpop.xlane.xlu0 %30
  %v32 = vrcp.pop 32.0
  %v33 = vmul.f32 %v28, %v32
  %v34 = vmul.f32 %v31, %v32
  %v35 = vsub.f32 %v23, %v33
  %v36 = vsub.f32 %v24, %v34
  %v37 = vmul.f32 %v35, %v35
  %v38 = vmul.f32 %v36, %v36
  %v39 = vsel %vm25, %v37, 0.0
  %40 = vadd.xlane.f32.xlu0 %v39
  %v41 = vpop.xlane.xlu0 %40
  %v42 = vsel %vm25, %v38, 0.0
  %43 = vadd.xlane.f32.xlu0 %v42
  %v44 = vpop.xlane.xlu0 %43
  %v45 = vmul.f32 %v41, %v32
  %v46 = vmul.f32 %v44, %v32
  %v47 = vadd.f32 %v45, 1e-05
  %v48 = vadd.f32 %v46, 1e-05
  %v49 = vrsqrt.pop %v47
  %v50 = vrsqrt.pop %v48
  %v51 = vmul.f32 %v35, %v49
  %v52 = vmul.f32 %v36, %v50
  %v53 = vld [vmem:[%s1] sm:$0x1]
  %v55 = vlaneseq
  %v56 = vshrl.u32 %v55, 7
  %v57 = vsub.s32 0, %v56
  %v58 = vrot.slane %v53, %v57
  %v60 = vmul.f32 %v51, %v58
  %v61 = vmul.f32 %v52, %v58
  %v62 = vld [vmem:[%s2] sm:$0x1]
  %v64 = vlaneseq
  %v65 = vshrl.u32 %v64, 7
  %v66 = vsub.s32 0, %v65
  %v67 = vrot.slane %v62, %v66
  %v69 = vadd.f32 %v60, %v67
  %v70 = vadd.f32 %v61, %v67
  %v71 = vpack.c.bf16 %v70, %v69
  %v72 = vld [vmem:[%s3] sm:$0xf]
  %v73 = vld [vmem:[%s3 + $0x4] sm:$0xf]
  %v74 = vld [vmem:[%s3 + $0x8] sm:$0xf]
  %v75 = vld [vmem:[%s3 + $0xc] sm:$0xf]
  %v76 = vld [vmem:[%s4] sm:$0x1]
  %v78 = vlaneseq
  %v79 = vshrl.u32 %v78, 7
  %v80 = vsub.s32 0, %v79
  %v81 = vrot.slane %v76, %v80
  %v87 = vunpack.c.l.b16 %v72
  %v88 = vunpack.c.l.b16 %v73
  %v89 = vunpack.c.l.b16 %v74
  %v90 = vunpack.c.l.b16 %v75
  %v91 = vpack.c.b16 %v88, %v87
  %v92 = vpack.c.b16 %v90, %v89
  %v96 = vsel %vm25, %v71, 0
  %98 = vmatprep.subr.bf16.mxu0 0
  %99 = vmatpush1.bf16.msra.mxu0 %v91
  %100 = vmatprep.subr.bf16.mxu0 0
  %101 = vmatpush1.bf16.msra.mxu0 %v92
  %102 = vmatprep.subr.bf16.mxu0 0
  %103 = vmatpush1.bf16.msra.mxu0 0
  %104 = vmatprep.subr.bf16.mxu0 0
  %105 = vmatpush1.bf16.msra.mxu0 0
  %106 = vmatprep.subr.bf16.mxu0 0
  %107 = vmatpush1.bf16.msra.mxu0 0
  %108 = vmatprep.subr.bf16.mxu0 0
  %109 = vmatpush1.bf16.msra.mxu0 0
  %110 = vmatprep.subr.bf16.mxu0 0
  %111 = vmatpush1.bf16.msra.mxu0 0
  %112 = vmatprep.subr.bf16.mxu0 0
  %113 = vmatpush1.bf16.msra.mxu0 0
  %114 = vmatprep.subr.bf16.mxu0 0
  %115 = vmatpush1.bf16.msra.mxu0 0
  %116 = vmatprep.subr.bf16.mxu0 0
  %117 = vmatpush1.bf16.msra.mxu0 0
  %118 = vmatprep.subr.bf16.mxu0 0
  %119 = vmatpush1.bf16.msra.mxu0 0
  %120 = vmatprep.subr.bf16.mxu0 0
  %121 = vmatpush1.bf16.msra.mxu0 0
  %122 = vmatprep.subr.bf16.mxu0 0
  %123 = vmatpush1.bf16.msra.mxu0 0
  %124 = vmatprep.subr.bf16.mxu0 0
  %125 = vmatpush1.bf16.msra.mxu0 0
  %126 = vmatprep.subr.bf16.mxu0 0
  %127 = vmatpush1.bf16.msra.mxu0 0
  %128 = vmatprep.subr.bf16.mxu0 0
  %129 = vmatpush1.bf16.msra.mxu0 0
  %130 = vmatprep.mubr.bf16.mxu0 0
  %131 = vmatmul.mubr.bf16.gmra.mrb[0].mxu0 %v96
  %v132 = vpop.f32.mrb[0].mxu0
  %v133 = vadd.f32 %v81, %v132
  %v134 = vpop.f32.mrb[0].mxu0
  %v135 = vpop.f32.mrb[0].mxu0
  %v136 = vadd.f32 %v81, %v135
  %v137 = vpop.f32.mrb[0].mxu0
  %138 = vdwg.mxu0
  %v139 = vmul.f32 %v133, 1.702
  %v140 = vmul.f32 %v136, 1.702
  %v141 = vxor.u32 %v139, 2147483648
  %v142 = vxor.u32 %v140, 2147483648
  %v143 = vmul.f32 %v141, 1.442695
  %v144 = vpow.pop %v143
  %v145 = vmul.f32 %v142, 1.442695
  %v146 = vpow.pop %v145
  %v147 = vadd.f32 %v144, 1.0
  %v148 = vadd.f32 %v146, 1.0
  %v149 = vrcp.pop %v147
  %v150 = vmul.f32 1.0, %v149
  %v151 = vrcp.pop %v148
  %v152 = vmul.f32 1.0, %v151
  %v153 = vmul.f32 %v133, %v150
  %v154 = vmul.f32 %v136, %v152
  %v155 = vpack.c.bf16 %v154, %v153
  %v157 = vunpack.c.l.b16 %v155
  %v158 = vunpack.c.h.b16 %v155
  %v159 = vpack.c.b16 %v157, %v157
  %v160 = vpack.c.b16 %v158, %v158
  %163 = vst [vmem:[%s5] sm:$0xf] %v159
  %164 = vst [vmem:[%s5 + $0x4] sm:$0xf] %v160
  // Predicated region
  $region22: #{visual_transformer_forward.18} parent=0 // pred_check
    _
  $region23: #{visual_transformer_forward.18} parent=0 // pred_check_branch
    %166 = sbr.rel (0) target = $region25
  $region24: #{visual_transformer_forward.18} parent=0 // pred_region
    _
  $region25: #{visual_transformer_forward.18} parent=0 // pred_fallthru
    _
  // Predicated region
  $region26: #{visual_transformer_forward.18} parent=0 // pred_check
    _
  $region27: #{visual_transformer_forward.18} parent=0 // pred_check_branch
    %168 = sbr.rel (0) target = $region29
  $region28: #{visual_transformer_forward.18} parent=0 // pred_region
    _
  $region29: #{visual_transformer_forward.18} parent=0 // pred_fallthru
    _

// kernel: visual_transformer_forward.25
$region0: #{visual_transformer_forward.25}
  #allocation0 [shape = 'u32[]', space=smem, size = 0x4, offset = 0x4, fixed_abs, tag = 'smem constant byte address 0x4 - core index']
  #allocation1 [shape = 'u32[144,128]{1,0:T(1,128)}', space=vmem, size = 0x12000, scoped, tag = 'internal scratch']
  %s0 = inlined_call_operand.vmem [shape: bf16[8,32], index: 0, kind: input, shape index: {}]
  %s1 = inlined_call_operand.vmem [shape: f32[1,32], index: 1, kind: input, shape index: {}]
  %s2 = inlined_call_operand.vmem [shape: f32[1,32], index: 2, kind: input, shape index: {}]
  %s3 = inlined_call_operand.vmem [shape: bf16[32,128], index: 3, kind: input, shape index: {}]
  %s4 = inlined_call_operand.vmem [shape: f32[1,128], index: 4, kind: input, shape index: {}]
  %s5 = inlined_call_operand.vmem [shape: f32[8,128], index: 5, kind: output, shape index: {}]
  %s6 = sld [smem:[#allocation0]]
  $region30: #{visual_transformer_forward.25} parent=0
    _
  %s8 = ssub.s32 1, %s6
  %s9 = scalar_select 0, %s8, %s6
  // Predicated region
  $region2: #{visual_transformer_forward.25} parent=0 // pred_check
    _
  $region3: #{visual_transformer_forward.25} parent=0 // pred_check_branch
    %11 = sbr.rel (0) target = $region5
  $region4: #{visual_transformer_forward.25} parent=0 // pred_region
    _
  $region5: #{visual_transformer_forward.25} parent=0 // pred_fallthru
    _
  // Predicated region
  $region6: #{visual_transformer_forward.25} parent=0 // pred_check
    _
  $region7: #{visual_transformer_forward.25} parent=0 // pred_check_branch
    %13 = sbr.rel (0) target = $region9
  $region8: #{visual_transformer_forward.25} parent=0 // pred_region
    _
  $region9: #{visual_transformer_forward.25} parent=0 // pred_fallthru
    _
  // Predicated region
  $region10: #{visual_transformer_forward.25} parent=0 // pred_check
    _
  $region11: #{visual_transformer_forward.25} parent=0 // pred_check_branch
    %15 = sbr.rel (0) target = $region13
  $region12: #{visual_transformer_forward.25} parent=0 // pred_region
    _
  $region13: #{visual_transformer_forward.25} parent=0 // pred_fallthru
    _
  // Predicated region
  $region14: #{visual_transformer_forward.25} parent=0 // pred_check
    _
  $region15: #{visual_transformer_forward.25} parent=0 // pred_check_branch
    %17 = sbr.rel (0) target = $region17
  $region16: #{visual_transformer_forward.25} parent=0 // pred_region
    _
  $region17: #{visual_transformer_forward.25} parent=0 // pred_fallthru
    _
  // Predicated region
  $region18: #{visual_transformer_forward.25} parent=0 // pred_check
    _
  $region19: #{visual_transformer_forward.25} parent=0 // pred_check_branch
    %19 = sbr.rel (0) target = $region21
  $region20: #{visual_transformer_forward.25} parent=0 // pred_region
    _
  $region21: #{visual_transformer_forward.25} parent=0 // pred_fallthru
    _
  %v21 = vld [vmem:[%s0] sm:$0xf]
  %v22 = vunpack.c.l.bf16 %v21
  %vm23 = vcmask 261120
  %v24 = vsel %vm23, %v22, 0.0
  %25 = vadd.xlane.f32.xlu0 %v24
  %v26 = vpop.xlane.xlu0 %25
  %v27 = vrcp.pop 32.0
  %v28 = vmul.f32 %v26, %v27
  %v29 = vsub.f32 %v22, %v28
  %v30 = vmul.f32 %v29, %v29
  %v31 = vsel %vm23, %v30, 0.0
  %32 = vadd.xlane.f32.xlu0 %v31
  %v33 = vpop.xlane.xlu0 %32
  %v34 = vmul.f32 %v33, %v27
  %v35 = vadd.f32 %v34, 1e-05
  %v36 = vrsqrt.pop %v35
  %v37 = vmul.f32 %v29, %v36
  %v38 = vld [vmem:[%s1] sm:$0x1]
  %v40 = vlaneseq
  %v41 = vshrl.u32 %v40, 7
  %v42 = vsub.s32 0, %v41
  %v43 = vrot.slane %v38, %v42
  %v45 = vmul.f32 %v37, %v43
  %v46 = vld [vmem:[%s2] sm:$0x1]
  %v48 = vlaneseq
  %v49 = vshrl.u32 %v48, 7
  %v50 = vsub.s32 0, %v49
  %v51 = vrot.slane %v46, %v50
  %v53 = vadd.f32 %v45, %v51
  %v54 = vpack.c.bf16 %v53, %v53
  %v55 = vld [vmem:[%s3] sm:$0xf]
  %v56 = vld [vmem:[%s3 + $0x4] sm:$0xf]
  %v57 = vld [vmem:[%s3 + $0x8] sm:$0xf]
  %v58 = vld [vmem:[%s3 + $0xc] sm:$0xf]
  %v59 = vld [vmem:[%s4] sm:$0x1]
  %v61 = vlaneseq
  %v62 = vshrl.u32 %v61, 7
  %v63 = vsub.s32 0, %v62
  %v64 = vrot.slane %v59, %v63
  %v70 = vunpack.c.l.b16 %v55
  %v71 = vunpack.c.l.b16 %v56
  %v72 = vunpack.c.l.b16 %v57
  %v73 = vunpack.c.l.b16 %v58
  %v74 = vpack.c.b16 %v71, %v70
  %v75 = vpack.c.b16 %v73, %v72
  %v79 = vsel %vm23, %v54, 0
  %81 = vmatprep.subr.bf16.mxu0 0
  %82 = vmatpush1.bf16.msra.mxu0 %v74
  %83 = vmatprep.subr.bf16.mxu0 0
  %84 = vmatpush1.bf16.msra.mxu0 %v75
  %85 = vmatprep.subr.bf16.mxu0 0
  %86 = vmatpush1.bf16.msra.mxu0 0
  %87 = vmatprep.subr.bf16.mxu0 0
  %88 = vmatpush1.bf16.msra.mxu0 0
  %89 = vmatprep.subr.bf16.mxu0 0
  %90 = vmatpush1.bf16.msra.mxu0 0
  %91 = vmatprep.subr.bf16.mxu0 0
  %92 = vmatpush1.bf16.msra.mxu0 0
  %93 = vmatprep.subr.bf16.mxu0 0
  %94 = vmatpush1.bf16.msra.mxu0 0
  %95 = vmatprep.subr.bf16.mxu0 0
  %96 = vmatpush1.bf16.msra.mxu0 0
  %97 = vmatprep.subr.bf16.mxu0 0
  %98 = vmatpush1.bf16.msra.mxu0 0
  %99 = vmatprep.subr.bf16.mxu0 0
  %100 = vmatpush1.bf16.msra.mxu0 0
  %101 = vmatprep.subr.bf16.mxu0 0
  %102 = vmatpush1.bf16.msra.mxu0 0
  %103 = vmatprep.subr.bf16.mxu0 0
  %104 = vmatpush1.bf16.msra.mxu0 0
  %105 = vmatprep.subr.bf16.mxu0 0
  %106 = vmatpush1.bf16.msra.mxu0 0
  %107 = vmatprep.subr.bf16.mxu0 0
  %108 = vmatpush1.bf16.msra.mxu0 0
  %109 = vmatprep.subr.bf16.mxu0 0
  %110 = vmatpush1.bf16.msra.mxu0 0
  %111 = vmatprep.subr.bf16.mxu0 0
  %112 = vmatpush1.bf16.msra.mxu0 0
  %113 = vmatprep.mubr.bf16.mxu0 0
  %114 = vmatmul.mubr.bf16.gmra.mrb[0].mxu0 %v79
  %v115 = vpop.f32.mrb[0].mxu0
  %v116 = vadd.f32 %v64, %v115
  %v117 = vpop.f32.mrb[0].mxu0
  %v118 = vpop.f32.mrb[0].mxu0
  %v119 = vpop.f32.mrb[0].mxu0
  %120 = vdwg.mxu0
  %121 = vst [vmem:[%s5] sm:$0xff] %v116
  // Predicated region
  $region22: #{visual_transformer_forward.25} parent=0 // pred_check
    _
  $region23: #{visual_transformer_forward.25} parent=0 // pred_check_branch
    %123 = sbr.rel (0) target = $region25
  $region24: #{visual_transformer_forward.25} parent=0 // pred_region
    _
  $region25: #{visual_transformer_forward.25} parent=0 // pred_fallthru
    _
  // Predicated region
  $region26: #{visual_transformer_forward.25} parent=0 // pred_check
    _
  $region27: #{visual_transformer_forward.25} parent=0 // pred_check_branch
    %125 = sbr.rel (0) target = $region29
  $region28: #{visual_transformer_forward.25} parent=0 // pred_region
    _
  $region29: #{visual_transformer_forward.25} parent=0 // pred_fallthru
    _

</llo_original>
